<compile_context>
chip_gen: v7x
topology: tpu7x:2x2x1
jax: 0.10.0
libtpu: 0.0.40
codegen_flags: <defaults>
</compile_context>

<pallas_src>
import functools

import jax
import jax.numpy as jnp
from jax import lax
from jax.experimental import pallas as pl
from jax.experimental.pallas import tpu as pltpu


# ---------------------------------------------------------------------------
# Stage 1: LayerNorm + fused lin_V / lin_E projection + both softmaxes.
# ---------------------------------------------------------------------------
def _proj_softmax_kernel(e_ref, mask_ref, gamma_ref, beta_ref, wf_ref, bf_ref,
                         v_ref, a_in_ref, a_out_ref, *, num_heads):
    e = e_ref[0]                       # (N, N, C)
    m = mask_ref[0]                    # (N, N, H)
    n, _, c = e.shape
    h = num_heads

    # tri_ln_e: LayerNorm over channels (torch default eps = 1e-5).
    mu = jnp.mean(e, axis=-1, keepdims=True)
    xc = e - mu
    var = jnp.mean(xc * xc, axis=-1, keepdims=True)
    e_ln = xc * lax.rsqrt(var + 1e-5)
    e_ln = e_ln * gamma_ref[0][None, None, :] + beta_ref[0][None, None, :]

    # Fused lin_V | lin_E: one MXU matmul of output width 2C + 2H.
    x2d = e_ln.reshape(n * n, c)
    p = jnp.dot(x2d, wf_ref[...], preferred_element_type=jnp.float32) + bf_ref[0]

    # V (both halves) goes straight to the contraction stage.
    v_ref[0] = p[:, :2 * c]

    # Attention logits and softmaxes.  "in": softmax over the second node axis
    # (torch dim=2); "out": softmax over the first node axis (torch dim=1).
    ee = p[:, 2 * c:].reshape(n, n, 2 * h)

    s_in = ee[:, :, :h] + m
    s_in = s_in - jnp.max(s_in, axis=1, keepdims=True)
    p_in = jnp.exp(s_in)
    a_in = p_in * pl.reciprocal(jnp.sum(p_in, axis=1, keepdims=True), approx=True)

    s_out = ee[:, :, h:] + m
    s_out = s_out - jnp.max(s_out, axis=0, keepdims=True)
    p_out = jnp.exp(s_out)
    a_out = p_out * pl.reciprocal(jnp.sum(p_out, axis=0, keepdims=True), approx=True)

    a_in_ref[0] = a_in.reshape(n * n, h)
    a_out_ref[0] = a_out.reshape(n * n, h)


# ---------------------------------------------------------------------------
# Stage 2: triangle contraction.  One MXU matmul per (batch, branch, head) and
# per output-row tile:  Va[g, i, :] = A[g, i, :] @ V[g].
# ---------------------------------------------------------------------------
def _triangle_matmul_kernel(a_ref, v_ref, o_ref):
    o_ref[0] = jnp.dot(a_ref[0], v_ref[0], preferred_element_type=jnp.float32)


# ---------------------------------------------------------------------------
# Stage 3: lin_O (row-tiled matmul + bias).
# ---------------------------------------------------------------------------
def _lin_o_kernel(x_ref, w_ref, b_ref, o_ref):
    o_ref[...] = (
        jnp.dot(x_ref[...], w_ref[...], preferred_element_type=jnp.float32)
        + b_ref[0])


def triangle_update_ungated(e, mask, params, num_heads):
    b, n, _, c = e.shape
    h = num_heads
    d = c // h
    gamma, beta, wv, bv, we, be, wo, bo = (
        params[k] for k in ("gamma", "beta", "wv", "bv", "we", "be", "wo", "bo"))

    # Fuse lin_V and lin_E into one projection (single weight push / drain).
    w_fused = jnp.concatenate([wv, we], axis=1)            # (C, 2C + 2H)
    b_fused = jnp.concatenate([bv, be], axis=0)            # (2C + 2H,)
    pw = 2 * c + 2 * h

    # ------------------ Stage 1: LN + projection + softmaxes -----------------
    kernel1 = functools.partial(_proj_softmax_kernel, num_heads=h)
    v_all, a_in, a_out = pl.pallas_call(
        kernel1,
        out_shape=(jax.ShapeDtypeStruct((b, n * n, 2 * c), jnp.float32),
                   jax.ShapeDtypeStruct((b, n * n, h), jnp.float32),
                   jax.ShapeDtypeStruct((b, n * n, h), jnp.float32)),
        grid=(b,),
        in_specs=[
            pl.BlockSpec((1, n, n, c), lambda bi: (bi, 0, 0, 0)),   # e
            pl.BlockSpec((1, n, n, h), lambda bi: (bi, 0, 0, 0)),   # mask
            pl.BlockSpec((1, c), lambda bi: (0, 0)),                # ln gamma
            pl.BlockSpec((1, c), lambda bi: (0, 0)),                # ln beta
            pl.BlockSpec((c, pw), lambda bi: (0, 0)),               # W_V|W_E
            pl.BlockSpec((1, pw), lambda bi: (0, 0)),               # b_V|b_E
        ],
        out_specs=[
            pl.BlockSpec((1, n * n, 2 * c), lambda bi: (bi, 0, 0)),
            pl.BlockSpec((1, n * n, h), lambda bi: (bi, 0, 0)),
            pl.BlockSpec((1, n * n, h), lambda bi: (bi, 0, 0)),
        ],
        compiler_params=pltpu.CompilerParams(dimension_semantics=("parallel",)),
    )(e, mask, gamma.reshape(1, c), beta.reshape(1, c),
      w_fused, b_fused.reshape(1, pw))

    # ------------- XLA layout glue: head-major batched operands --------------
    v4 = v_all.reshape(b, n, n, 2 * c)
    v_in = v4[..., :c].reshape(b, n, n, d, h)        # [b, j, k, d, h]
    v_out = v4[..., c:].reshape(b, n, n, d, h)       # [b, k, j, d, h]
    v_in_r = v_in.transpose(0, 4, 2, 1, 3).reshape(b, h, n, n * d)   # [b,h,k,(j,d)]
    v_out_r = v_out.transpose(0, 4, 1, 2, 3).reshape(b, h, n, n * d)  # [b,h,k,(j,d)]
    a_in_r = a_in.reshape(b, n, n, h).transpose(0, 3, 1, 2)           # [b,h,i,k]
    a_out_r = a_out.reshape(b, n, n, h).transpose(0, 3, 2, 1)         # [b,h,i,k]

    g = b * 2 * h
    a_g = jnp.concatenate([a_in_r, a_out_r], axis=1).reshape(g, n, n)
    v_g = jnp.concatenate([v_in_r, v_out_r], axis=1).reshape(g, n, n * d)

    # ------------- Stage 2: triangle contraction on the MXU ------------------
    tm = min(128, n)
    n_it = pl.cdiv(n, tm)
    va_g = pl.pallas_call(
        _triangle_matmul_kernel,
        out_shape=jax.ShapeDtypeStruct((g, n, n * d), jnp.float32),
        grid=(g, n_it),
        in_specs=[
            pl.BlockSpec((1, tm, n), lambda gi, it: (gi, it, 0)),        # A rows
            pl.BlockSpec((1, n, n * d), lambda gi, it: (gi, 0, 0)),      # V slab
        ],
        out_specs=pl.BlockSpec((1, tm, n * d), lambda gi, it: (gi, it, 0)),
        compiler_params=pltpu.CompilerParams(
            dimension_semantics=("parallel", "parallel")),
    )(a_g, v_g)

    # ------ XLA glue: channel = d*2H + (branch*H + h), i.e. torch's cat ------
    va = va_g.reshape(b, 2 * h, n, n, d).transpose(0, 2, 3, 4, 1)
    va_flat = va.reshape(b * n * n, 2 * c)

    # --------------------------- Stage 3: lin_O ------------------------------
    m3 = b * n * n
    tm3 = m3 if m3 <= 512 else 512
    out_flat = pl.pallas_call(
        _lin_o_kernel,
        out_shape=jax.ShapeDtypeStruct((m3, c), jnp.float32),
        grid=(pl.cdiv(m3, tm3),),
        in_specs=[
            pl.BlockSpec((tm3, 2 * c), lambda i: (i, 0)),
            pl.BlockSpec((2 * c, c), lambda i: (0, 0)),
            pl.BlockSpec((1, c), lambda i: (0, 0)),
        ],
        out_specs=pl.BlockSpec((tm3, c), lambda i: (i, 0)),
        compiler_params=pltpu.CompilerParams(dimension_semantics=("parallel",)),
    )(va_flat, wo, bo.reshape(1, c))

    return out_flat.reshape(b, n, n, c)


def reference_forward(e, mask, params, num_heads):
    """Pure-JAX transcription of the PyTorch forward (eval mode)."""
    b, n, _, c = e.shape
    h = num_heads
    d = c // h
    gamma, beta, wv, bv, we, be, wo, bo = (
        params[k] for k in ("gamma", "beta", "wv", "bv", "we", "be", "wo", "bo"))
    mu = jnp.mean(e, axis=-1, keepdims=True)
    var = jnp.mean((e - mu) ** 2, axis=-1, keepdims=True)
    e_ln = (e - mu) / jnp.sqrt(var + 1e-5) * gamma + beta
    v = e_ln @ wv + bv
    ee = e_ln @ we + be
    v_in, v_out = v[..., :c], v[..., c:]
    e_in, e_out = ee[..., :h], ee[..., h:]
    v_in = v_in.reshape(b, n, n, d, h)
    v_out = v_out.reshape(b, n, n, d, h)
    a_in = jax.nn.softmax(e_in + mask, axis=2)
    va_in = jnp.einsum('bikh,bjkdh->bijdh', a_in, v_in)
    a_out = jax.nn.softmax(e_out + mask, axis=1)
    va_out = jnp.einsum('bkih,bkjdh->bijdh', a_out, v_out)
    va = jnp.concatenate([va_in, va_out], axis=-1).reshape(b, n, n, 2 * c)
    return va @ wo + bo


if __name__ == "__main__":
    # edge_width=32, num_heads=4 -> dot_dim=8; num_edges (nodes) = 8; batch = 2.
    B, N, C, H = 2, 8, 32, 4
    key = jax.random.PRNGKey(0)
    ks = jax.random.split(key, 10)
    e = jax.random.normal(ks[0], (B, N, N, C), jnp.float32)
    mask = 0.5 * jax.random.normal(ks[1], (B, N, N, H), jnp.float32)
    params = dict(
        gamma=1.0 + 0.1 * jax.random.normal(ks[2], (C,), jnp.float32),
        beta=0.1 * jax.random.normal(ks[3], (C,), jnp.float32),
        wv=jax.random.normal(ks[4], (C, 2 * C), jnp.float32) / jnp.sqrt(C),
        bv=0.1 * jax.random.normal(ks[5], (2 * C,), jnp.float32),
        we=jax.random.normal(ks[6], (C, 2 * H), jnp.float32) / jnp.sqrt(C),
        be=0.1 * jax.random.normal(ks[7], (2 * H,), jnp.float32),
        wo=jax.random.normal(ks[8], (2 * C, C), jnp.float32) / jnp.sqrt(2 * C),
        bo=0.1 * jax.random.normal(ks[9], (C,), jnp.float32),
    )

    # TODO(synk): training-time source_dropout bernoulli masking not implemented
    # (module default is 0 and forward only applies it in training mode).
    fwd = jax.jit(functools.partial(triangle_update_ungated, num_heads=H))
    out = jax.block_until_ready(fwd(e, mask, params))
    ref = reference_forward(e, mask, params, num_heads=H)
    err = float(jnp.max(jnp.abs(out - ref)))
    # Tolerance allows for the approximate EUP reciprocal used in the softmax.
    assert err < 2e-2, f"max abs error {err}"
    print("KERNEL_OK")
</pallas_src>

<mosaic_0001>
module attributes {stable_mosaic.version = 11 : i64} {
  func.func @_proj_softmax_kernel(%arg0: i32, %arg1: memref<1x8x8x32xf32, #tpu.memory_space<vmem>>, %arg2: memref<1x8x8x4xf32, #tpu.memory_space<vmem>>, %arg3: memref<1x32xf32, #tpu.memory_space<vmem>>, %arg4: memref<1x32xf32, #tpu.memory_space<vmem>>, %arg5: memref<32x72xf32, #tpu.memory_space<vmem>>, %arg6: memref<1x72xf32, #tpu.memory_space<vmem>>, %arg7: memref<1x64x64xf32, #tpu.memory_space<vmem>>, %arg8: memref<1x64x4xf32, #tpu.memory_space<vmem>>, %arg9: memref<1x64x4xf32, #tpu.memory_space<vmem>>) attributes {dimension_semantics = [#tpu.dimension_semantics<parallel>], iteration_bounds = array<i64: 2>, scalar_prefetch = 0 : i64, scratch_operands = 0 : i64, tpu.core_type = #tpu.core_type<tc>, window_params = [{transform_indices = @transform_0, window_bounds = array<i64: 1, 8, 8, 32>}, {transform_indices = @transform_1, window_bounds = array<i64: 1, 8, 8, 4>}, {pipeline_mode = #tpu.pipeline_mode<synchronous>, transform_indices = @transform_2, window_bounds = array<i64: 1, 32>}, {pipeline_mode = #tpu.pipeline_mode<synchronous>, transform_indices = @transform_3, window_bounds = array<i64: 1, 32>}, {pipeline_mode = #tpu.pipeline_mode<synchronous>, transform_indices = @transform_4, window_bounds = array<i64: 32, 72>}, {pipeline_mode = #tpu.pipeline_mode<synchronous>, transform_indices = @transform_5, window_bounds = array<i64: 1, 72>}, {transform_indices = @transform_6, window_bounds = array<i64: 1, 64, 64>}, {transform_indices = @transform_7, window_bounds = array<i64: 1, 64, 4>}, {transform_indices = @transform_8, window_bounds = array<i64: 1, 64, 4>}]} {
    %c0 = arith.constant 0 : index
    %c0_0 = arith.constant 0 : index
    %c0_1 = arith.constant 0 : index
    %c0_2 = arith.constant 0 : index
    %0 = vector.load %arg1[%c0, %c0_0, %c0_1, %c0_2] : memref<1x8x8x32xf32, #tpu.memory_space<vmem>>, vector<1x8x8x32xf32>
    %1 = vector.shape_cast %0 : vector<1x8x8x32xf32> to vector<8x8x32xf32>
    %c0_3 = arith.constant 0 : index
    %c0_4 = arith.constant 0 : index
    %c0_5 = arith.constant 0 : index
    %c0_6 = arith.constant 0 : index
    %2 = vector.load %arg2[%c0_3, %c0_4, %c0_5, %c0_6] : memref<1x8x8x4xf32, #tpu.memory_space<vmem>>, vector<1x8x8x4xf32>
    %3 = vector.shape_cast %2 : vector<1x8x8x4xf32> to vector<8x8x4xf32>
    %cst = arith.constant dense<0.000000e+00> : vector<8x8xf32>
    %4 = vector.multi_reduction <add>, %1, %cst [2] : vector<8x8x32xf32> to vector<8x8xf32>
    %5 = vector.shape_cast %4 : vector<8x8xf32> to vector<8x8x1xf32>
    %cst_7 = arith.constant 3.200000e+01 : f32
    %6 = vector.broadcast %cst_7 : f32 to vector<8x8x1xf32>
    %7 = arith.divf %5, %6 : vector<8x8x1xf32>
    %8 = vector.broadcast %7 : vector<8x8x1xf32> to vector<8x8x32xf32>
    %9 = arith.subf %1, %8 : vector<8x8x32xf32>
    %10 = arith.mulf %9, %9 : vector<8x8x32xf32>
    %cst_8 = arith.constant dense<0.000000e+00> : vector<8x8xf32>
    %11 = vector.multi_reduction <add>, %10, %cst_8 [2] : vector<8x8x32xf32> to vector<8x8xf32>
    %12 = vector.shape_cast %11 : vector<8x8xf32> to vector<8x8x1xf32>
    %cst_9 = arith.constant 3.200000e+01 : f32
    %13 = vector.broadcast %cst_9 : f32 to vector<8x8x1xf32>
    %14 = arith.divf %12, %13 : vector<8x8x1xf32>
    %cst_10 = arith.constant 9.99999974E-6 : f32
    %15 = vector.broadcast %cst_10 : f32 to vector<8x8x1xf32>
    %16 = arith.addf %14, %15 : vector<8x8x1xf32>
    %17 = math.rsqrt %16 : vector<8x8x1xf32>
    %18 = vector.broadcast %17 : vector<8x8x1xf32> to vector<8x8x32xf32>
    %19 = arith.mulf %9, %18 : vector<8x8x32xf32>
    %c0_11 = arith.constant 0 : index
    %c0_12 = arith.constant 0 : index
    %20 = vector.load %arg3[%c0_11, %c0_12] : memref<1x32xf32, #tpu.memory_space<vmem>>, vector<1x32xf32>
    %21 = vector.shape_cast %20 : vector<1x32xf32> to vector<32xf32>
    %22 = vector.shape_cast %21 : vector<32xf32> to vector<1x1x32xf32>
    %23 = vector.broadcast %22 : vector<1x1x32xf32> to vector<8x8x32xf32>
    %24 = arith.mulf %19, %23 : vector<8x8x32xf32>
    %c0_13 = arith.constant 0 : index
    %c0_14 = arith.constant 0 : index
    %25 = vector.load %arg4[%c0_13, %c0_14] : memref<1x32xf32, #tpu.memory_space<vmem>>, vector<1x32xf32>
    %26 = vector.shape_cast %25 : vector<1x32xf32> to vector<32xf32>
    %27 = vector.shape_cast %26 : vector<32xf32> to vector<1x1x32xf32>
    %28 = vector.broadcast %27 : vector<1x1x32xf32> to vector<8x8x32xf32>
    %29 = arith.addf %24, %28 : vector<8x8x32xf32>
    %30 = vector.shape_cast %29 : vector<8x8x32xf32> to vector<64x32xf32>
    %c0_15 = arith.constant 0 : index
    %c0_16 = arith.constant 0 : index
    %31 = vector.load %arg5[%c0_15, %c0_16] : memref<32x72xf32, #tpu.memory_space<vmem>>, vector<32x72xf32>
    %cst_17 = arith.constant dense<0.000000e+00> : vector<64x72xf32>
    %32 = tpu.matmul %30, %31, %cst_17 {dimension_numbers = #tpu.dot_dimension_numbers<[1], [0], [0], [1], [0, 0, 1, 1], [], []>} : vector<64x32xf32>, vector<32x72xf32>, vector<64x72xf32> -> vector<64x72xf32>
    %c0_18 = arith.constant 0 : index
    %c0_19 = arith.constant 0 : index
    %33 = vector.load %arg6[%c0_18, %c0_19] : memref<1x72xf32, #tpu.memory_space<vmem>>, vector<1x72xf32>
    %34 = vector.shape_cast %33 : vector<1x72xf32> to vector<72xf32>
    %35 = vector.shape_cast %34 : vector<72xf32> to vector<1x72xf32>
    %36 = vector.broadcast %35 : vector<1x72xf32> to vector<64x72xf32>
    %37 = arith.addf %32, %36 : vector<64x72xf32>
    %38 = vector.extract_strided_slice %37 {offsets = [0, 0], sizes = [64, 64], strides = [1, 1]} : vector<64x72xf32> to vector<64x64xf32>
    %c0_20 = arith.constant 0 : index
    %c0_21 = arith.constant 0 : index
    %c0_22 = arith.constant 0 : index
    %39 = vector.load %arg7[%c0_20, %c0_21, %c0_22] : memref<1x64x64xf32, #tpu.memory_space<vmem>>, vector<1x64x64xf32>
    %40 = vector.shape_cast %39 : vector<1x64x64xf32> to vector<64x64xf32>
    %41 = vector.shape_cast %38 : vector<64x64xf32> to vector<1x64x64xf32>
    tpu.vector_store %arg7[%c0_20, %c0_21, %c0_22], %41 {strides = array<i32>} : memref<1x64x64xf32, #tpu.memory_space<vmem>>, vector<1x64x64xf32>,
    %42 = vector.extract_strided_slice %37 {offsets = [0, 64], sizes = [64, 8], strides = [1, 1]} : vector<64x72xf32> to vector<64x8xf32>
    %43 = vector.shape_cast %42 : vector<64x8xf32> to vector<8x8x8xf32>
    %44 = vector.extract_strided_slice %43 {offsets = [0, 0, 0], sizes = [8, 8, 4], strides = [1, 1, 1]} : vector<8x8x8xf32> to vector<8x8x4xf32>
    %45 = arith.addf %44, %3 : vector<8x8x4xf32>
    %cst_23 = arith.constant dense<0xFF800000> : vector<8x4xf32>
    %46 = vector.multi_reduction <maximumf>, %45, %cst_23 [1] : vector<8x8x4xf32> to vector<8x4xf32>
    %47 = vector.shape_cast %46 : vector<8x4xf32> to vector<8x1x4xf32>
    %48 = vector.broadcast %47 : vector<8x1x4xf32> to vector<8x8x4xf32>
    %49 = arith.subf %45, %48 : vector<8x8x4xf32>
    %50 = math.exp %49 : vector<8x8x4xf32>
    %cst_24 = arith.constant dense<0.000000e+00> : vector<8x4xf32>
    %51 = vector.multi_reduction <add>, %50, %cst_24 [1] : vector<8x8x4xf32> to vector<8x4xf32>
    %52 = vector.shape_cast %51 : vector<8x4xf32> to vector<8x1x4xf32>
    %53 = tpu.reciprocal %52 {approx = true} : vector<8x1x4xf32> -> vector<8x1x4xf32>
    %54 = vector.broadcast %53 : vector<8x1x4xf32> to vector<8x8x4xf32>
    %55 = arith.mulf %50, %54 : vector<8x8x4xf32>
    %56 = vector.extract_strided_slice %43 {offsets = [0, 0, 4], sizes = [8, 8, 4], strides = [1, 1, 1]} : vector<8x8x8xf32> to vector<8x8x4xf32>
    %57 = arith.addf %56, %3 : vector<8x8x4xf32>
    %cst_25 = arith.constant dense<0xFF800000> : vector<8x4xf32>
    %58 = vector.multi_reduction <maximumf>, %57, %cst_25 [0] : vector<8x8x4xf32> to vector<8x4xf32>
    %59 = vector.shape_cast %58 : vector<8x4xf32> to vector<1x8x4xf32>
    %60 = vector.broadcast %59 : vector<1x8x4xf32> to vector<8x8x4xf32>
    %61 = arith.subf %57, %60 : vector<8x8x4xf32>
    %62 = math.exp %61 : vector<8x8x4xf32>
    %cst_26 = arith.constant dense<0.000000e+00> : vector<8x4xf32>
    %63 = vector.multi_reduction <add>, %62, %cst_26 [0] : vector<8x8x4xf32> to vector<8x4xf32>
    %64 = vector.shape_cast %63 : vector<8x4xf32> to vector<1x8x4xf32>
    %65 = tpu.reciprocal %64 {approx = true} : vector<1x8x4xf32> -> vector<1x8x4xf32>
    %66 = vector.broadcast %65 : vector<1x8x4xf32> to vector<8x8x4xf32>
    %67 = arith.mulf %62, %66 : vector<8x8x4xf32>
    %68 = vector.shape_cast %55 : vector<8x8x4xf32> to vector<64x4xf32>
    %c0_27 = arith.constant 0 : index
    %c0_28 = arith.constant 0 : index
    %c0_29 = arith.constant 0 : index
    %69 = vector.load %arg8[%c0_27, %c0_28, %c0_29] : memref<1x64x4xf32, #tpu.memory_space<vmem>>, vector<1x64x4xf32>
    %70 = vector.shape_cast %69 : vector<1x64x4xf32> to vector<64x4xf32>
    %71 = vector.shape_cast %68 : vector<64x4xf32> to vector<1x64x4xf32>
    tpu.vector_store %arg8[%c0_27, %c0_28, %c0_29], %71 {strides = array<i32>} : memref<1x64x4xf32, #tpu.memory_space<vmem>>, vector<1x64x4xf32>,
    %72 = vector.shape_cast %67 : vector<8x8x4xf32> to vector<64x4xf32>
    %c0_30 = arith.constant 0 : index
    %c0_31 = arith.constant 0 : index
    %c0_32 = arith.constant 0 : index
    %73 = vector.load %arg9[%c0_30, %c0_31, %c0_32] : memref<1x64x4xf32, #tpu.memory_space<vmem>>, vector<1x64x4xf32>
    %74 = vector.shape_cast %73 : vector<1x64x4xf32> to vector<64x4xf32>
    %75 = vector.shape_cast %72 : vector<64x4xf32> to vector<1x64x4xf32>
    tpu.vector_store %arg9[%c0_30, %c0_31, %c0_32], %75 {strides = array<i32>} : memref<1x64x4xf32, #tpu.memory_space<vmem>>, vector<1x64x4xf32>,
    return
  }
  func.func @transform_0(%arg0: i32) -> (i32, i32, i32, i32) {
    %c0_i32 = arith.constant 0 : i32
    %c0_i32_0 = arith.constant 0 : i32
    %c0_i32_1 = arith.constant 0 : i32
    %c0_i32_2 = arith.constant 0 : i32
    return %arg0, %c0_i32, %c0_i32_0, %c0_i32_1 : i32, i32, i32, i32
  }
  func.func @transform_1(%arg0: i32) -> (i32, i32, i32, i32) {
    %c0_i32 = arith.constant 0 : i32
    %c0_i32_0 = arith.constant 0 : i32
    %c0_i32_1 = arith.constant 0 : i32
    %c0_i32_2 = arith.constant 0 : i32
    return %arg0, %c0_i32, %c0_i32_0, %c0_i32_1 : i32, i32, i32, i32
  }
  func.func @transform_2(%arg0: i32) -> (i32, i32) {
    %c0_i32 = arith.constant 0 : i32
    %c0_i32_0 = arith.constant 0 : i32
    %c0_i32_1 = arith.constant 0 : i32
    return %c0_i32, %c0_i32_0 : i32, i32
  }
  func.func @transform_3(%arg0: i32) -> (i32, i32) {
    %c0_i32 = arith.constant 0 : i32
    %c0_i32_0 = arith.constant 0 : i32
    %c0_i32_1 = arith.constant 0 : i32
    return %c0_i32, %c0_i32_0 : i32, i32
  }
  func.func @transform_4(%arg0: i32) -> (i32, i32) {
    %c0_i32 = arith.constant 0 : i32
    %c0_i32_0 = arith.constant 0 : i32
    %c0_i32_1 = arith.constant 0 : i32
    return %c0_i32, %c0_i32_0 : i32, i32
  }
  func.func @transform_5(%arg0: i32) -> (i32, i32) {
    %c0_i32 = arith.constant 0 : i32
    %c0_i32_0 = arith.constant 0 : i32
    %c0_i32_1 = arith.constant 0 : i32
    return %c0_i32, %c0_i32_0 : i32, i32
  }
  func.func @transform_6(%arg0: i32) -> (i32, i32, i32) {
    %c0_i32 = arith.constant 0 : i32
    %c0_i32_0 = arith.constant 0 : i32
    %c0_i32_1 = arith.constant 0 : i32
    return %arg0, %c0_i32, %c0_i32_0 : i32, i32, i32
  }
  func.func @transform_7(%arg0: i32) -> (i32, i32, i32) {
    %c0_i32 = arith.constant 0 : i32
    %c0_i32_0 = arith.constant 0 : i32
    %c0_i32_1 = arith.constant 0 : i32
    return %arg0, %c0_i32, %c0_i32_0 : i32, i32, i32
  }
  func.func @transform_8(%arg0: i32) -> (i32, i32, i32) {
    %c0_i32 = arith.constant 0 : i32
    %c0_i32_0 = arith.constant 0 : i32
    %c0_i32_1 = arith.constant 0 : i32
    return %arg0, %c0_i32, %c0_i32_0 : i32, i32, i32
  }
}

module attributes {stable_mosaic.version = 11 : i64} {
  func.func @_triangle_matmul_kernel(%arg0: i32, %arg1: i32, %arg2: memref<1x8x8xf32, #tpu.memory_space<vmem>>, %arg3: memref<1x8x64xf32, #tpu.memory_space<vmem>>, %arg4: memref<1x8x64xf32, #tpu.memory_space<vmem>>) attributes {dimension_semantics = [#tpu.dimension_semantics<parallel>, #tpu.dimension_semantics<parallel>], iteration_bounds = array<i64: 16, 1>, scalar_prefetch = 0 : i64, scratch_operands = 0 : i64, tpu.core_type = #tpu.core_type<tc>, window_params = [{transform_indices = @transform_0, window_bounds = array<i64: 1, 8, 8>}, {transform_indices = @transform_1, window_bounds = array<i64: 1, 8, 64>}, {transform_indices = @transform_2, window_bounds = array<i64: 1, 8, 64>}]} {
    %c0 = arith.constant 0 : index
    %c0_0 = arith.constant 0 : index
    %c0_1 = arith.constant 0 : index
    %0 = vector.load %arg2[%c0, %c0_0, %c0_1] : memref<1x8x8xf32, #tpu.memory_space<vmem>>, vector<1x8x8xf32>
    %1 = vector.shape_cast %0 : vector<1x8x8xf32> to vector<8x8xf32>
    %c0_2 = arith.constant 0 : index
    %c0_3 = arith.constant 0 : index
    %c0_4 = arith.constant 0 : index
    %2 = vector.load %arg3[%c0_2, %c0_3, %c0_4] : memref<1x8x64xf32, #tpu.memory_space<vmem>>, vector<1x8x64xf32>
    %3 = vector.shape_cast %2 : vector<1x8x64xf32> to vector<8x64xf32>
    %cst = arith.constant dense<0.000000e+00> : vector<8x64xf32>
    %4 = tpu.matmul %1, %3, %cst {dimension_numbers = #tpu.dot_dimension_numbers<[1], [0], [0], [1], [0, 0, 1, 1], [], []>} : vector<8x8xf32>, vector<8x64xf32>, vector<8x64xf32> -> vector<8x64xf32>
    %c0_5 = arith.constant 0 : index
    %c0_6 = arith.constant 0 : index
    %c0_7 = arith.constant 0 : index
    %5 = vector.load %arg4[%c0_5, %c0_6, %c0_7] : memref<1x8x64xf32, #tpu.memory_space<vmem>>, vector<1x8x64xf32>
    %6 = vector.shape_cast %5 : vector<1x8x64xf32> to vector<8x64xf32>
    %7 = vector.shape_cast %4 : vector<8x64xf32> to vector<1x8x64xf32>
    tpu.vector_store %arg4[%c0_5, %c0_6, %c0_7], %7 {strides = array<i32>} : memref<1x8x64xf32, #tpu.memory_space<vmem>>, vector<1x8x64xf32>,
    return
  }
  func.func @transform_0(%arg0: i32, %arg1: i32) -> (i32, i32, i32) {
    %c0_i32 = arith.constant 0 : i32
    %c0_i32_0 = arith.constant 0 : i32
    return %arg0, %arg1, %c0_i32 : i32, i32, i32
  }
  func.func @transform_1(%arg0: i32, %arg1: i32) -> (i32, i32, i32) {
    %c0_i32 = arith.constant 0 : i32
    %c0_i32_0 = arith.constant 0 : i32
    %c0_i32_1 = arith.constant 0 : i32
    return %arg0, %c0_i32, %c0_i32_0 : i32, i32, i32
  }
  func.func @transform_2(%arg0: i32, %arg1: i32) -> (i32, i32, i32) {
    %c0_i32 = arith.constant 0 : i32
    %c0_i32_0 = arith.constant 0 : i32
    return %arg0, %arg1, %c0_i32 : i32, i32, i32
  }
}

module attributes {stable_mosaic.version = 11 : i64} {
  func.func @_lin_o_kernel(%arg0: i32, %arg1: memref<128x64xf32, #tpu.memory_space<vmem>>, %arg2: memref<64x32xf32, #tpu.memory_space<vmem>>, %arg3: memref<1x32xf32, #tpu.memory_space<vmem>>, %arg4: memref<128x32xf32, #tpu.memory_space<vmem>>) attributes {dimension_semantics = [#tpu.dimension_semantics<parallel>], iteration_bounds = array<i64: 1>, scalar_prefetch = 0 : i64, scratch_operands = 0 : i64, tpu.core_type = #tpu.core_type<tc>, window_params = [{transform_indices = @transform_0, window_bounds = array<i64: 128, 64>}, {pipeline_mode = #tpu.pipeline_mode<synchronous>, transform_indices = @transform_1, window_bounds = array<i64: 64, 32>}, {pipeline_mode = #tpu.pipeline_mode<synchronous>, transform_indices = @transform_2, window_bounds = array<i64: 1, 32>}, {transform_indices = @transform_3, window_bounds = array<i64: 128, 32>}]} {
    %c0 = arith.constant 0 : index
    %c0_0 = arith.constant 0 : index
    %0 = vector.load %arg1[%c0, %c0_0] : memref<128x64xf32, #tpu.memory_space<vmem>>, vector<128x64xf32>
    %c0_1 = arith.constant 0 : index
    %c0_2 = arith.constant 0 : index
    %1 = vector.load %arg2[%c0_1, %c0_2] : memref<64x32xf32, #tpu.memory_space<vmem>>, vector<64x32xf32>
    %cst = arith.constant dense<0.000000e+00> : vector<128x32xf32>
    %2 = tpu.matmul %0, %1, %cst {dimension_numbers = #tpu.dot_dimension_numbers<[1], [0], [0], [1], [0, 0, 1, 1], [], []>} : vector<128x64xf32>, vector<64x32xf32>, vector<128x32xf32> -> vector<128x32xf32>
    %c0_3 = arith.constant 0 : index
    %c0_4 = arith.constant 0 : index
    %3 = vector.load %arg3[%c0_3, %c0_4] : memref<1x32xf32, #tpu.memory_space<vmem>>, vector<1x32xf32>
    %4 = vector.shape_cast %3 : vector<1x32xf32> to vector<32xf32>
    %5 = vector.shape_cast %4 : vector<32xf32> to vector<1x32xf32>
    %6 = vector.broadcast %5 : vector<1x32xf32> to vector<128x32xf32>
    %7 = arith.addf %2, %6 : vector<128x32xf32>
    %c0_5 = arith.constant 0 : index
    %c0_6 = arith.constant 0 : index
    %8 = vector.load %arg4[%c0_5, %c0_6] : memref<128x32xf32, #tpu.memory_space<vmem>>, vector<128x32xf32>
    tpu.vector_store %arg4[%c0_5, %c0_6], %7 {strides = array<i32>} : memref<128x32xf32, #tpu.memory_space<vmem>>, vector<128x32xf32>,
    return
  }
  func.func @transform_0(%arg0: i32) -> (i32, i32) {
    %c0_i32 = arith.constant 0 : i32
    %c0_i32_0 = arith.constant 0 : i32
    return %arg0, %c0_i32 : i32, i32
  }
  func.func @transform_1(%arg0: i32) -> (i32, i32) {
    %c0_i32 = arith.constant 0 : i32
    %c0_i32_0 = arith.constant 0 : i32
    %c0_i32_1 = arith.constant 0 : i32
    return %c0_i32, %c0_i32_0 : i32, i32
  }
  func.func @transform_2(%arg0: i32) -> (i32, i32) {
    %c0_i32 = arith.constant 0 : i32
    %c0_i32_0 = arith.constant 0 : i32
    %c0_i32_1 = arith.constant 0 : i32
    return %c0_i32, %c0_i32_0 : i32, i32
  }
  func.func @transform_3(%arg0: i32) -> (i32, i32) {
    %c0_i32 = arith.constant 0 : i32
    %c0_i32_0 = arith.constant 0 : i32
    return %arg0, %c0_i32 : i32, i32
  }
}

</mosaic_0001>

<llo_original>
// kernel: triangle_update_ungated.3
$region0: #{triangle_update_ungated.3}
  #allocation0 [shape = 'u32[]', space=smem, size = 0x4, offset = 0x4, fixed_abs, tag = 'smem constant byte address 0x4 - core index']
  #allocation1 [shape = 'u32[144,128]{1,0:T(1,128)}', space=vmem, size = 0x12000, scoped, tag = 'internal scratch']
  %s0 = inlined_call_operand.vmem [shape: f32[2,8,8,32], index: 0, kind: input, shape index: {}]
  %s1 = inlined_call_operand.vmem [shape: f32[2,8,8,4], index: 1, kind: input, shape index: {}]
  %s2 = inlined_call_operand.vmem [shape: f32[1,32], index: 2, kind: input, shape index: {}]
  %s3 = inlined_call_operand.vmem [shape: f32[1,32], index: 3, kind: input, shape index: {}]
  %s4 = inlined_call_operand.vmem [shape: f32[32,72], index: 4, kind: input, shape index: {}]
  %s5 = inlined_call_operand.vmem [shape: f32[1,72], index: 5, kind: input, shape index: {}]
  %s6 = inlined_call_operand.vmem [shape: f32[2,64,64], index: 6, kind: output, shape index: {0}]
  %s7 = inlined_call_operand.vmem [shape: f32[2,64,4], index: 7, kind: output, shape index: {1}]
  %s8 = inlined_call_operand.vmem [shape: f32[2,64,4], index: 8, kind: output, shape index: {2}]
  %9 = xla_tuple %s6, %s7, %s8
  %s10 = sld [smem:[#allocation0]]
  $region73: #{triangle_update_ungated.3} parent=0
    _
  %s12 = ssub.s32 1, %s10
  %s13 = scalar_select 0, %s12, %s10
  loop: start=0, step=1, limit=4
  $region2: #{triangle_update_ungated.3} parent=0 // loop_pre_header
    _
  $region3: #{triangle_update_ungated.3} parent=0 // loop_header
    %s15 = sphi 0, %s19
    %p16 = scmp.ge.s32.totalorder %s15, 4
    %s25 = sphi 0, %s27
    %s28 = sphi 0, %s25
    %s29 = sphi 0, %s28
    %s45 = sphi 0, %s29
    %s51 = sphi 0, %s53
    %s54 = sphi 0, %s51
    %s55 = sphi 0, %s54
    %s71 = sphi 0, %s55
    %s75 = sphi 0, %s75
    %s77 = sphi 0, %s75
    %s78 = sphi 0, %s77
    %s92 = sphi 0, %s78
    %s96 = sphi 0, %s96
    %s98 = sphi 0, %s96
    %s99 = sphi 0, %s98
    %s113 = sphi 0, %s99
    %s117 = sphi 0, %s117
    %s119 = sphi 0, %s117
    %s120 = sphi 0, %s119
    %s134 = sphi 0, %s120
    %s138 = sphi 0, %s138
    %s140 = sphi 0, %s138
    %s141 = sphi 0, %s140
    %s155 = sphi 0, %s141
    %s161 = sphi 0, %s163
    %s164 = sphi 0, %s161
    %s165 = sphi 0, %s164
    %s181 = sphi 0, %s165
    %s187 = sphi 0, %s189
    %s190 = sphi 0, %s187
    %s191 = sphi 0, %s190
    %s207 = sphi 0, %s191
    %s213 = sphi 0, %s215
    %s216 = sphi 0, %s213
    %s217 = sphi 0, %s216
    %s233 = sphi 0, %s217
  $region4: #{triangle_update_ungated.3} parent=0 // loop_header_branch
    %18 = sbr.rel (%p16) target = $region8
  $region5: #{triangle_update_ungated.3} parent=0 // loop_body
    %s20 = ssub.s32 %s15, 1
    %s21 = ssub.s32 %s15, 2
    %s22 = sadd.s32 %s15, 1
    %s23 = ssub.s32 %s15, %s22
    %p24 = scmp.eq.s32.totalorder %s23, 0
    %s26 = sadd.s32 %s25, 1
    %s27 = scalar_select %p24, %s25, %s26
    %p30 = pneg %p24
    %p31 = scmp.eq.s32.totalorder %s15, 1
    %p32 = por %p30, %p31
    %p33 = scmp.ne.s32.totalorder %s25, %s28
    %p34 = scmp.eq.s32.totalorder %s15, 0
    %p35 = por %p33, %p34
    %p36 = scmp.ne.s32.totalorder %s25, %s28
    %p37 = scmp.eq.s32.totalorder %s20, 1
    %p38 = por %p36, %p37
    %p39 = scmp.ne.s32.totalorder %s28, %s29
    %p40 = scmp.eq.s32.totalorder %s20, 0
    %p41 = por %p39, %p40
    %p42 = scmp.ne.s32.totalorder %s28, %s29
    %p43 = scmp.eq.s32.totalorder %s21, 1
    %p44 = por %p42, %p43
    %p46 = scmp.ne.s32.totalorder %s29, %s45
    %p47 = scmp.eq.s32.totalorder %s21, 0
    %p48 = por %p46, %p47
    %s49 = ssub.s32 %s15, %s22
    %p50 = scmp.eq.s32.totalorder %s49, 0
    %s52 = sadd.s32 %s51, 1
    %s53 = scalar_select %p50, %s51, %s52
    %p56 = pneg %p50
    %p57 = scmp.eq.s32.totalorder %s15, 1
    %p58 = por %p56, %p57
    %p59 = scmp.ne.s32.totalorder %s51, %s54
    %p60 = scmp.eq.s32.totalorder %s15, 0
    %p61 = por %p59, %p60
    %p62 = scmp.ne.s32.totalorder %s51, %s54
    %p63 = scmp.eq.s32.totalorder %s20, 1
    %p64 = por %p62, %p63
    %p65 = scmp.ne.s32.totalorder %s54, %s55
    %p66 = scmp.eq.s32.totalorder %s20, 0
    %p67 = por %p65, %p66
    %p68 = scmp.ne.s32.totalorder %s54, %s55
    %p69 = scmp.eq.s32.totalorder %s21, 1
    %p70 = por %p68, %p69
    %p72 = scmp.ne.s32.totalorder %s55, %s71
    %p73 = scmp.eq.s32.totalorder %s21, 0
    %p74 = por %p72, %p73
    %s76 = sadd.s32 %s75, 1
    %p79 = scmp.eq.s32.totalorder %s15, 1
    %p80 = scmp.ne.s32.totalorder %s75, %s77
    %p81 = scmp.eq.s32.totalorder %s15, 0
    %p82 = por %p80, %p81
    %p83 = scmp.ne.s32.totalorder %s75, %s77
    %p84 = scmp.eq.s32.totalorder %s20, 1
    %p85 = por %p83, %p84
    %p86 = scmp.ne.s32.totalorder %s77, %s78
    %p87 = scmp.eq.s32.totalorder %s20, 0
    %p88 = por %p86, %p87
    %p89 = scmp.ne.s32.totalorder %s77, %s78
    %p90 = scmp.eq.s32.totalorder %s21, 1
    %p91 = por %p89, %p90
    %p93 = scmp.ne.s32.totalorder %s78, %s92
    %p94 = scmp.eq.s32.totalorder %s21, 0
    %p95 = por %p93, %p94
    %s97 = sadd.s32 %s96, 1
    %p100 = scmp.eq.s32.totalorder %s15, 1
    %p101 = scmp.ne.s32.totalorder %s96, %s98
    %p102 = scmp.eq.s32.totalorder %s15, 0
    %p103 = por %p101, %p102
    %p104 = scmp.ne.s32.totalorder %s96, %s98
    %p105 = scmp.eq.s32.totalorder %s20, 1
    %p106 = por %p104, %p105
    %p107 = scmp.ne.s32.totalorder %s98, %s99
    %p108 = scmp.eq.s32.totalorder %s20, 0
    %p109 = por %p107, %p108
    %p110 = scmp.ne.s32.totalorder %s98, %s99
    %p111 = scmp.eq.s32.totalorder %s21, 1
    %p112 = por %p110, %p111
    %p114 = scmp.ne.s32.totalorder %s99, %s113
    %p115 = scmp.eq.s32.totalorder %s21, 0
    %p116 = por %p114, %p115
    %s118 = sadd.s32 %s117, 1
    %p121 = scmp.eq.s32.totalorder %s15, 1
    %p122 = scmp.ne.s32.totalorder %s117, %s119
    %p123 = scmp.eq.s32.totalorder %s15, 0
    %p124 = por %p122, %p123
    %p125 = scmp.ne.s32.totalorder %s117, %s119
    %p126 = scmp.eq.s32.totalorder %s20, 1
    %p127 = por %p125, %p126
    %p128 = scmp.ne.s32.totalorder %s119, %s120
    %p129 = scmp.eq.s32.totalorder %s20, 0
    %p130 = por %p128, %p129
    %p131 = scmp.ne.s32.totalorder %s119, %s120
    %p132 = scmp.eq.s32.totalorder %s21, 1
    %p133 = por %p131, %p132
    %p135 = scmp.ne.s32.totalorder %s120, %s134
    %p136 = scmp.eq.s32.totalorder %s21, 0
    %p137 = por %p135, %p136
    %s139 = sadd.s32 %s138, 1
    %p142 = scmp.eq.s32.totalorder %s15, 1
    %p143 = scmp.ne.s32.totalorder %s138, %s140
    %p144 = scmp.eq.s32.totalorder %s15, 0
    %p145 = por %p143, %p144
    %p146 = scmp.ne.s32.totalorder %s138, %s140
    %p147 = scmp.eq.s32.totalorder %s20, 1
    %p148 = por %p146, %p147
    %p149 = scmp.ne.s32.totalorder %s140, %s141
    %p150 = scmp.eq.s32.totalorder %s20, 0
    %p151 = por %p149, %p150
    %p152 = scmp.ne.s32.totalorder %s140, %s141
    %p153 = scmp.eq.s32.totalorder %s21, 1
    %p154 = por %p152, %p153
    %p156 = scmp.ne.s32.totalorder %s141, %s155
    %p157 = scmp.eq.s32.totalorder %s21, 0
    %p158 = por %p156, %p157
    %s159 = ssub.s32 %s15, %s22
    %p160 = scmp.eq.s32.totalorder %s159, 0
    %s162 = sadd.s32 %s161, 1
    %s163 = scalar_select %p160, %s161, %s162
    %p166 = pneg %p160
    %p167 = scmp.eq.s32.totalorder %s15, 1
    %p168 = por %p166, %p167
    %p169 = scmp.ne.s32.totalorder %s161, %s164
    %p170 = scmp.eq.s32.totalorder %s15, 0
    %p171 = por %p169, %p170
    %p172 = scmp.ne.s32.totalorder %s161, %s164
    %p173 = scmp.eq.s32.totalorder %s20, 1
    %p174 = por %p172, %p173
    %p175 = scmp.ne.s32.totalorder %s164, %s165
    %p176 = scmp.eq.s32.totalorder %s20, 0
    %p177 = por %p175, %p176
    %p178 = scmp.ne.s32.totalorder %s164, %s165
    %p179 = scmp.eq.s32.totalorder %s21, 1
    %p180 = por %p178, %p179
    %p182 = scmp.ne.s32.totalorder %s165, %s181
    %p183 = scmp.eq.s32.totalorder %s21, 0
    %p184 = por %p182, %p183
    %s185 = ssub.s32 %s15, %s22
    %p186 = scmp.eq.s32.totalorder %s185, 0
    %s188 = sadd.s32 %s187, 1
    %s189 = scalar_select %p186, %s187, %s188
    %p192 = pneg %p186
    %p193 = scmp.eq.s32.totalorder %s15, 1
    %p194 = por %p192, %p193
    %p195 = scmp.ne.s32.totalorder %s187, %s190
    %p196 = scmp.eq.s32.totalorder %s15, 0
    %p197 = por %p195, %p196
    %p198 = scmp.ne.s32.totalorder %s187, %s190
    %p199 = scmp.eq.s32.totalorder %s20, 1
    %p200 = por %p198, %p199
    %p201 = scmp.ne.s32.totalorder %s190, %s191
    %p202 = scmp.eq.s32.totalorder %s20, 0
    %p203 = por %p201, %p202
    %p204 = scmp.ne.s32.totalorder %s190, %s191
    %p205 = scmp.eq.s32.totalorder %s21, 1
    %p206 = por %p204, %p205
    %p208 = scmp.ne.s32.totalorder %s191, %s207
    %p209 = scmp.eq.s32.totalorder %s21, 0
    %p210 = por %p208, %p209
    %s211 = ssub.s32 %s15, %s22
    %p212 = scmp.eq.s32.totalorder %s211, 0
    %s214 = sadd.s32 %s213, 1
    %s215 = scalar_select %p212, %s213, %s214
    %p218 = pneg %p212
    %p219 = scmp.eq.s32.totalorder %s15, 1
    %p220 = por %p218, %p219
    %p221 = scmp.ne.s32.totalorder %s213, %s216
    %p222 = scmp.eq.s32.totalorder %s15, 0
    %p223 = por %p221, %p222
    %p224 = scmp.ne.s32.totalorder %s213, %s216
    %p225 = scmp.eq.s32.totalorder %s20, 1
    %p226 = por %p224, %p225
    %p227 = scmp.ne.s32.totalorder %s216, %s217
    %p228 = scmp.eq.s32.totalorder %s20, 0
    %p229 = por %p227, %p228
    %p230 = scmp.ne.s32.totalorder %s216, %s217
    %p231 = scmp.eq.s32.totalorder %s21, 1
    %p232 = por %p230, %p231
    %p234 = scmp.ne.s32.totalorder %s217, %s233
    %p235 = scmp.eq.s32.totalorder %s21, 0
    %p236 = por %p234, %p235
    %p237 = scmp.le.s32.totalorder 1, %s15
    %p238 = scmp.lt.s32.totalorder %s15, 3
    %p239 = pnand %p237, %p238
    %p240 = pneg %p239
    // Predicated region
    $region9: #{triangle_update_ungated.3} parent=5 // pred_check
      _
    $region10: #{triangle_update_ungated.3} parent=5 // pred_check_branch
      %242 = sbr.rel (%p239) target = $region12
    $region11: #{triangle_update_ungated.3} parent=5 // pred_region
      %s243 = ssub.s32 %s15, 1
      // Predicated region
      $region13: #{triangle_update_ungated.3} parent=11 // pred_check
        %p244 = pneg %p88
      $region14: #{triangle_update_ungated.3} parent=11 // pred_check_branch
        %246 = sbr.rel (%p244) target = $region16
      $region15: #{triangle_update_ungated.3} parent=11 // pred_region
        _
      $region16: #{triangle_update_ungated.3} parent=11 // pred_fallthru
        _
      // Predicated region
      $region17: #{triangle_update_ungated.3} parent=11 // pred_check
        %p247 = pneg %p109
      $region18: #{triangle_update_ungated.3} parent=11 // pred_check_branch
        %249 = sbr.rel (%p247) target = $region20
      $region19: #{triangle_update_ungated.3} parent=11 // pred_region
        _
      $region20: #{triangle_update_ungated.3} parent=11 // pred_fallthru
        _
      // Predicated region
      $region21: #{triangle_update_ungated.3} parent=11 // pred_check
        %p250 = pneg %p130
      $region22: #{triangle_update_ungated.3} parent=11 // pred_check_branch
        %252 = sbr.rel (%p250) target = $region24
      $region23: #{triangle_update_ungated.3} parent=11 // pred_region
        _
      $region24: #{triangle_update_ungated.3} parent=11 // pred_fallthru
        _
      // Predicated region
      $region25: #{triangle_update_ungated.3} parent=11 // pred_check
        %p253 = pneg %p151
      $region26: #{triangle_update_ungated.3} parent=11 // pred_check_branch
        %255 = sbr.rel (%p253) target = $region28
      $region27: #{triangle_update_ungated.3} parent=11 // pred_region
        _
      $region28: #{triangle_update_ungated.3} parent=11 // pred_fallthru
        _
    $region12: #{triangle_update_ungated.3} parent=5 // pred_fallthru
      _
    %p256 = scmp.lt.s32.totalorder %s15, 2
    // Predicated region
    $region29: #{triangle_update_ungated.3} parent=5 // pred_check
      %p257 = pneg %p256
    $region30: #{triangle_update_ungated.3} parent=5 // pred_check_branch
      %259 = sbr.rel (%p257) target = $region32
    $region31: #{triangle_update_ungated.3} parent=5 // pred_region
      // Predicated region
      $region33: #{triangle_update_ungated.3} parent=31 // pred_check
        %p260 = pneg %p35
      $region34: #{triangle_update_ungated.3} parent=31 // pred_check_branch
        %262 = sbr.rel (%p260) target = $region36
      $region35: #{triangle_update_ungated.3} parent=31 // pred_region
        %p263 = scmp.lt.s32.totalorder %s15, 1
        %s264 = scalar_select %p263, %s15, 1
        %s265 = smul.addr %s264, 8
        %s266 = smul.addr %s265, 8
        %s267 = scalar_lea.vmem %s0, %s266
      $region36: #{triangle_update_ungated.3} parent=31 // pred_fallthru
        _
      // Predicated region
      $region37: #{triangle_update_ungated.3} parent=31 // pred_check
        %p268 = pneg %p61
      $region38: #{triangle_update_ungated.3} parent=31 // pred_check_branch
        %270 = sbr.rel (%p268) target = $region40
      $region39: #{triangle_update_ungated.3} parent=31 // pred_region
        %p271 = scmp.lt.s32.totalorder %s15, 1
        %s272 = scalar_select %p271, %s15, 1
        %s273 = smul.addr %s272, 8
        %s274 = smul.addr %s273, 8
        %s275 = scalar_lea.vmem %s1, %s274
      $region40: #{triangle_update_ungated.3} parent=31 // pred_fallthru
        _
    $region32: #{triangle_update_ungated.3} parent=5 // pred_fallthru
      _
    %p276 = scmp.le.s32.totalorder 1, %s15
    %p277 = scmp.lt.s32.totalorder %s15, 3
    %p278 = pnand %p276, %p277
    %p279 = pneg %p278
    // Predicated region
    $region41: #{triangle_update_ungated.3} parent=5 // pred_check
      _
    $region42: #{triangle_update_ungated.3} parent=5 // pred_check_branch
      %281 = sbr.rel (%p278) target = $region44
    $region43: #{triangle_update_ungated.3} parent=5 // pred_region
      %s282 = ssub.s32 %s15, 1
      %p283 = scmp.lt.s32.totalorder %s20, 1
      %s284 = scalar_select %p283, %s20, 1
      %s285 = smul.addr %s284, 8
      %s286 = smul.addr %s285, 8
      %s287 = scalar_lea.vmem %s0, %s286
      %p288 = pneg %p41
      %p289 = pneg %p38
      %p290 = scmp.lt.s32.totalorder %s20, 1
      %s291 = scalar_select %p290, %s20, 1
      %s292 = smul.addr %s291, 8
      %s293 = smul.addr %s292, 8
      %s294 = scalar_lea.vmem %s1, %s293
      %p295 = pneg %p67
      %p296 = pneg %p64
      %p297 = pneg %p88
      %p298 = pneg %p85
      %p299 = pneg %p109
      %p300 = pneg %p106
      %p301 = pneg %p130
      %p302 = pneg %p127
      %p303 = pneg %p151
      %p304 = pneg %p148
      %p305 = pneg %p177
      %p306 = pneg %p174
      %p307 = scmp.lt.s32.totalorder %s20, 1
      %s308 = scalar_select %p307, %s20, 1
      %s309 = smul.addr %s308, 8
      %s310 = smul.addr %s309, 8
      %s311 = scalar_lea.vmem %s6, %s310
      %p312 = pneg %p203
      %p313 = pneg %p200
      %p314 = scmp.lt.s32.totalorder %s20, 1
      %s315 = scalar_select %p314, %s20, 1
      %s316 = smul.addr %s315, 8
      %s317 = smul.addr %s316, 8
      %s318 = scalar_lea.vmem %s7, %s317
      %p319 = pneg %p229
      %p320 = pneg %p226
      %p321 = scmp.lt.s32.totalorder %s20, 1
      %s322 = scalar_select %p321, %s20, 1
      %s323 = smul.addr %s322, 8
      %s324 = smul.addr %s323, 8
      %s325 = scalar_lea.vmem %s8, %s324
      %p326 = scmp.lt.s32.totalorder %s20, 1
      %s327 = scalar_select %p326, %s20, 1
      %s328 = smul.addr %s327, 8
      %s329 = smul.addr %s328, 8
      %s330 = scalar_lea.vmem %s0, %s329
      %p331 = scmp.lt.s32.totalorder %s20, 1
      %s332 = scalar_select %p331, %s20, 1
      %s333 = smul.addr %s332, 8
      %s334 = smul.addr %s333, 8
      %s335 = scalar_lea.vmem %s1, %s334
      %p336 = scmp.lt.s32.totalorder %s20, 1
      %s337 = scalar_select %p336, %s20, 1
      %s338 = smul.addr %s337, 8
      %s339 = smul.addr %s338, 8
      %s340 = scalar_lea.vmem %s6, %s339
      %p341 = scmp.lt.s32.totalorder %s20, 1
      %s342 = scalar_select %p341, %s20, 1
      %s343 = smul.addr %s342, 8
      %s344 = smul.addr %s343, 8
      %s345 = scalar_lea.vmem %s7, %s344
      %p346 = scmp.lt.s32.totalorder %s20, 1
      %s347 = scalar_select %p346, %s20, 1
      %s348 = smul.addr %s347, 8
      %s349 = smul.addr %s348, 8
      %s350 = scalar_lea.vmem %s8, %s349
      %v351 = vld [vmem:[%s330] sm:$0xff]
      %v352 = vld [vmem:[%s330 + $0x8] sm:$0xff]
      %v353 = vld [vmem:[%s330 + $0x10] sm:$0xff]
      %v354 = vld [vmem:[%s330 + $0x18] sm:$0xff]
      %v355 = vld [vmem:[%s330 + $0x20] sm:$0xff]
      %v356 = vld [vmem:[%s330 + $0x28] sm:$0xff]
      %v357 = vld [vmem:[%s330 + $0x30] sm:$0xff]
      %v358 = vld [vmem:[%s330 + $0x38] sm:$0xff]
      %v359 = vld [vmem:[%s335] sm:$0xff]
      %v360 = vld [vmem:[%s335 + $0x8] sm:$0xff]
      %v361 = vld [vmem:[%s335 + $0x10] sm:$0xff]
      %v362 = vld [vmem:[%s335 + $0x18] sm:$0xff]
      %v363 = vld [vmem:[%s335 + $0x20] sm:$0xff]
      %v364 = vld [vmem:[%s335 + $0x28] sm:$0xff]
      %v365 = vld [vmem:[%s335 + $0x30] sm:$0xff]
      %v366 = vld [vmem:[%s335 + $0x38] sm:$0xff]
      %vm367 = vcmask 261120
      %v368 = vsel %vm367, %v351, 0.0
      %369 = vadd.xlane.f32.xlu0 %v368
      %v370 = vpop.xlane.xlu0 %369
      %v371 = vsel %vm367, %v352, 0.0
      %372 = vadd.xlane.f32.xlu0 %v371
      %v373 = vpop.xlane.xlu0 %372
      %v374 = vsel %vm367, %v353, 0.0
      %375 = vadd.xlane.f32.xlu0 %v374
      %v376 = vpop.xlane.xlu0 %375
      %v377 = vsel %vm367, %v354, 0.0
      %378 = vadd.xlane.f32.xlu0 %v377
      %v379 = vpop.xlane.xlu0 %378
      %v380 = vsel %vm367, %v355, 0.0
      %381 = vadd.xlane.f32.xlu0 %v380
      %v382 = vpop.xlane.xlu0 %381
      %v383 = vsel %vm367, %v356, 0.0
      %384 = vadd.xlane.f32.xlu0 %v383
      %v385 = vpop.xlane.xlu0 %384
      %v386 = vsel %vm367, %v357, 0.0
      %387 = vadd.xlane.f32.xlu0 %v386
      %v388 = vpop.xlane.xlu0 %387
      %v389 = vsel %vm367, %v358, 0.0
      %390 = vadd.xlane.f32.xlu0 %v389
      %v391 = vpop.xlane.xlu0 %390
      %v392 = vrcp.pop 32.0
      %v393 = vmul.f32 %v370, %v392
      %v394 = vmul.f32 %v373, %v392
      %v395 = vmul.f32 %v376, %v392
      %v396 = vmul.f32 %v379, %v392
      %v397 = vmul.f32 %v382, %v392
      %v398 = vmul.f32 %v385, %v392
      %v399 = vmul.f32 %v388, %v392
      %v400 = vmul.f32 %v391, %v392
      %v401 = vsub.f32 %v351, %v393
      %v402 = vsub.f32 %v352, %v394
      %v403 = vsub.f32 %v353, %v395
      %v404 = vsub.f32 %v354, %v396
      %v405 = vsub.f32 %v355, %v397
      %v406 = vsub.f32 %v356, %v398
      %v407 = vsub.f32 %v357, %v399
      %v408 = vsub.f32 %v358, %v400
      %v409 = vmul.f32 %v401, %v401
      %v410 = vmul.f32 %v402, %v402
      %v411 = vmul.f32 %v403, %v403
      %v412 = vmul.f32 %v404, %v404
      %v413 = vmul.f32 %v405, %v405
      %v414 = vmul.f32 %v406, %v406
      %v415 = vmul.f32 %v407, %v407
      %v416 = vmul.f32 %v408, %v408
      %v417 = vsel %vm367, %v409, 0.0
      %418 = vadd.xlane.f32.xlu0 %v417
      %v419 = vpop.xlane.xlu0 %418
      %v420 = vsel %vm367, %v410, 0.0
      %421 = vadd.xlane.f32.xlu0 %v420
      %v422 = vpop.xlane.xlu0 %421
      %v423 = vsel %vm367, %v411, 0.0
      %424 = vadd.xlane.f32.xlu0 %v423
      %v425 = vpop.xlane.xlu0 %424
      %v426 = vsel %vm367, %v412, 0.0
      %427 = vadd.xlane.f32.xlu0 %v426
      %v428 = vpop.xlane.xlu0 %427
      %v429 = vsel %vm367, %v413, 0.0
      %430 = vadd.xlane.f32.xlu0 %v429
      %v431 = vpop.xlane.xlu0 %430
      %v432 = vsel %vm367, %v414, 0.0
      %433 = vadd.xlane.f32.xlu0 %v432
      %v434 = vpop.xlane.xlu0 %433
      %v435 = vsel %vm367, %v415, 0.0
      %436 = vadd.xlane.f32.xlu0 %v435
      %v437 = vpop.xlane.xlu0 %436
      %v438 = vsel %vm367, %v416, 0.0
      %439 = vadd.xlane.f32.xlu0 %v438
      %v440 = vpop.xlane.xlu0 %439
      %v441 = vmul.f32 %v419, %v392
      %v442 = vmul.f32 %v422, %v392
      %v443 = vmul.f32 %v425, %v392
      %v444 = vmul.f32 %v428, %v392
      %v445 = vmul.f32 %v431, %v392
      %v446 = vmul.f32 %v434, %v392
      %v447 = vmul.f32 %v437, %v392
      %v448 = vmul.f32 %v440, %v392
      %v449 = vadd.f32 %v441, 1e-05
      %v450 = vadd.f32 %v442, 1e-05
      %v451 = vadd.f32 %v443, 1e-05
      %v452 = vadd.f32 %v444, 1e-05
      %v453 = vadd.f32 %v445, 1e-05
      %v454 = vadd.f32 %v446, 1e-05
      %v455 = vadd.f32 %v447, 1e-05
      %v456 = vadd.f32 %v448, 1e-05
      %v457 = vrsqrt.pop %v449
      %v458 = vrsqrt.pop %v450
      %v459 = vrsqrt.pop %v451
      %v460 = vrsqrt.pop %v452
      %v461 = vrsqrt.pop %v453
      %v462 = vrsqrt.pop %v454
      %v463 = vrsqrt.pop %v455
      %v464 = vrsqrt.pop %v456
      %v465 = vmul.f32 %v401, %v457
      %v466 = vmul.f32 %v402, %v458
      %v467 = vmul.f32 %v403, %v459
      %v468 = vmul.f32 %v404, %v460
      %v469 = vmul.f32 %v405, %v461
      %v470 = vmul.f32 %v406, %v462
      %v471 = vmul.f32 %v407, %v463
      %v472 = vmul.f32 %v408, %v464
      %v473 = vld [vmem:[%s2] sm:$0x1]
      %v475 = vlaneseq
      %v476 = vshrl.u32 %v475, 7
      %v477 = vsub.s32 0, %v476
      %v478 = vrot.slane %v473, %v477
      %v480 = vmul.f32 %v465, %v478
      %v481 = vmul.f32 %v466, %v478
      %v482 = vmul.f32 %v467, %v478
      %v483 = vmul.f32 %v468, %v478
      %v484 = vmul.f32 %v469, %v478
      %v485 = vmul.f32 %v470, %v478
      %v486 = vmul.f32 %v471, %v478
      %v487 = vmul.f32 %v472, %v478
      %v488 = vld [vmem:[%s3] sm:$0x1]
      %v490 = vlaneseq
      %v491 = vshrl.u32 %v490, 7
      %v492 = vsub.s32 0, %v491
      %v493 = vrot.slane %v488, %v492
      %v495 = vadd.f32 %v480, %v493
      %v496 = vadd.f32 %v481, %v493
      %v497 = vadd.f32 %v482, %v493
      %v498 = vadd.f32 %v483, %v493
      %v499 = vadd.f32 %v484, %v493
      %v500 = vadd.f32 %v485, %v493
      %v501 = vadd.f32 %v486, %v493
      %v502 = vadd.f32 %v487, %v493
      %v503 = vld [vmem:[%s4] sm:$0xff]
      %v504 = vld [vmem:[%s4 + $0x8] sm:$0xff]
      %v505 = vld [vmem:[%s4 + $0x10] sm:$0xff]
      %v506 = vld [vmem:[%s4 + $0x18] sm:$0xff]
      %v507 = vld [vmem:[%s5] sm:$0x1]
      %v509 = vlaneseq
      %v510 = vshrl.u32 %v509, 7
      %v511 = vsub.s32 0, %v510
      %v512 = vrot.slane %v507, %v511
      %v515 = vsel %vm367, %v495, 0
      %v518 = vsel %vm367, %v496, 0
      %v521 = vsel %vm367, %v497, 0
      %v524 = vsel %vm367, %v498, 0
      %v527 = vsel %vm367, %v499, 0
      %v530 = vsel %vm367, %v500, 0
      %v533 = vsel %vm367, %v501, 0
      %v536 = vsel %vm367, %v502, 0
      %538 = vmatprep.subr.mxu0 0.0
      %539 = vmatpush1.msra.mxu0 %v503
      %540 = vmatprep.subr.mxu0 0.0
      %541 = vmatpush1.msra.mxu0 %v504
      %542 = vmatprep.subr.mxu0 0.0
      %543 = vmatpush1.msra.mxu0 %v505
      %544 = vmatprep.subr.mxu0 0.0
      %545 = vmatpush1.msra.mxu0 %v506
      %546 = vmatprep.subr.mxu0 0.0
      %547 = vmatpush1.msra.mxu0 0.0
      %548 = vmatprep.subr.mxu0 0.0
      %549 = vmatpush1.msra.mxu0 0.0
      %550 = vmatprep.subr.mxu0 0.0
      %551 = vmatpush1.msra.mxu0 0.0
      %552 = vmatprep.subr.mxu0 0.0
      %553 = vmatpush1.msra.mxu0 0.0
      %554 = vmatprep.subr.mxu0 0.0
      %555 = vmatpush1.msra.mxu0 0.0
      %556 = vmatprep.subr.mxu0 0.0
      %557 = vmatpush1.msra.mxu0 0.0
      %558 = vmatprep.subr.mxu0 0.0
      %559 = vmatpush1.msra.mxu0 0.0
      %560 = vmatprep.subr.mxu0 0.0
      %561 = vmatpush1.msra.mxu0 0.0
      %562 = vmatprep.subr.mxu0 0.0
      %563 = vmatpush1.msra.mxu0 0.0
      %564 = vmatprep.subr.mxu0 0.0
      %565 = vmatpush1.msra.mxu0 0.0
      %566 = vmatprep.subr.mxu0 0.0
      %567 = vmatpush1.msra.mxu0 0.0
      %568 = vmatprep.subr.mxu0 0.0
      %569 = vmatpush1.msra.mxu0 0.0
      %570 = vmatprep.subr.mxu0 0.0
      %571 = vmatpush1.msra.mxu0 0.0
      %572 = vmatprep.subr.mxu0 0.0
      %573 = vmatpush1.msra.mxu0 0.0
      %574 = vmatprep.subr.mxu0 0.0
      %575 = vmatpush1.msra.mxu0 0.0
      %576 = vmatprep.subr.mxu0 0.0
      %577 = vmatpush1.msra.mxu0 0.0
      %578 = vmatprep.subr.mxu0 0.0
      %579 = vmatpush1.msra.mxu0 0.0
      %580 = vmatprep.subr.mxu0 0.0
      %581 = vmatpush1.msra.mxu0 0.0
      %582 = vmatprep.subr.mxu0 0.0
      %583 = vmatpush1.msra.mxu0 0.0
      %584 = vmatprep.subr.mxu0 0.0
      %585 = vmatpush1.msra.mxu0 0.0
      %586 = vmatprep.subr.mxu0 0.0
      %587 = vmatpush1.msra.mxu0 0.0
      %588 = vmatprep.subr.mxu0 0.0
      %589 = vmatpush1.msra.mxu0 0.0
      %590 = vmatprep.subr.mxu0 0.0
      %591 = vmatpush1.msra.mxu0 0.0
      %592 = vmatprep.subr.mxu0 0.0
      %593 = vmatpush1.msra.mxu0 0.0
      %594 = vmatprep.subr.mxu0 0.0
      %595 = vmatpush1.msra.mxu0 0.0
      %596 = vmatprep.subr.mxu0 0.0
      %597 = vmatpush1.msra.mxu0 0.0
      %598 = vmatprep.subr.mxu0 0.0
      %599 = vmatpush1.msra.mxu0 0.0
      %600 = vmatprep.subr.mxu0 0.0
      %601 = vmatpush1.msra.mxu0 0.0
      %602 = vmatprep.mubr.f32.mxu0 0.0
      %603 = vmatmul.mubr.f32.gmra.mrb[0].mxu0 %v515
      %v604 = vpop.f32.mrb[0].mxu0
      %v605 = vadd.f32 %v512, %v604
      %v606 = vpop.f32.mrb[0].mxu0
      %607 = vmatprep.mubr.f32.mxu0 0.0
      %608 = vmatmul.mubr.f32.gmra.mrb[0].mxu0 %v518
      %v609 = vpop.f32.mrb[0].mxu0
      %v610 = vadd.f32 %v512, %v609
      %v611 = vpop.f32.mrb[0].mxu0
      %612 = vmatprep.mubr.f32.mxu0 0.0
      %613 = vmatmul.mubr.f32.gmra.mrb[0].mxu0 %v521
      %v614 = vpop.f32.mrb[0].mxu0
      %v615 = vadd.f32 %v512, %v614
      %v616 = vpop.f32.mrb[0].mxu0
      %617 = vmatprep.mubr.f32.mxu0 0.0
      %618 = vmatmul.mubr.f32.gmra.mrb[0].mxu0 %v524
      %v619 = vpop.f32.mrb[0].mxu0
      %v620 = vadd.f32 %v512, %v619
      %v621 = vpop.f32.mrb[0].mxu0
      %622 = vmatprep.mubr.f32.mxu0 0.0
      %623 = vmatmul.mubr.f32.gmra.mrb[0].mxu0 %v527
      %v624 = vpop.f32.mrb[0].mxu0
      %v625 = vadd.f32 %v512, %v624
      %v626 = vpop.f32.mrb[0].mxu0
      %627 = vmatprep.mubr.f32.mxu0 0.0
      %628 = vmatmul.mubr.f32.gmra.mrb[0].mxu0 %v530
      %v629 = vpop.f32.mrb[0].mxu0
      %v630 = vadd.f32 %v512, %v629
      %v631 = vpop.f32.mrb[0].mxu0
      %632 = vmatprep.mubr.f32.mxu0 0.0
      %633 = vmatmul.mubr.f32.gmra.mrb[0].mxu0 %v533
      %v634 = vpop.f32.mrb[0].mxu0
      %v635 = vadd.f32 %v512, %v634
      %v636 = vpop.f32.mrb[0].mxu0
      %637 = vmatprep.mubr.f32.mxu0 0.0
      %638 = vmatmul.mubr.f32.gmra.mrb[0].mxu0 %v536
      %v639 = vpop.f32.mrb[0].mxu0
      %v640 = vadd.f32 %v512, %v639
      %v641 = vpop.f32.mrb[0].mxu0
      %642 = vdwg.mxu0
      %vm643 = vcmask 523264
      %644 = vst.msk [vmem:[%s340] sm:$0xff] %vm643, %v605
      %645 = vst.msk [vmem:[%s340 + $0x8] sm:$0xff] %vm643, %v610
      %646 = vst.msk [vmem:[%s340 + $0x10] sm:$0xff] %vm643, %v615
      %647 = vst.msk [vmem:[%s340 + $0x18] sm:$0xff] %vm643, %v620
      %648 = vst.msk [vmem:[%s340 + $0x20] sm:$0xff] %vm643, %v625
      %649 = vst.msk [vmem:[%s340 + $0x28] sm:$0xff] %vm643, %v630
      %650 = vst.msk [vmem:[%s340 + $0x30] sm:$0xff] %vm643, %v635
      %651 = vst.msk [vmem:[%s340 + $0x38] sm:$0xff] %vm643, %v640
      %660 = vrot.lane.b32.xlu0 %v359, 64
      %v661 = vpop.permute.xlu0 %660
      %662 = vrot.lane.b32.xlu0 %v360, 64
      %v663 = vpop.permute.xlu0 %662
      %664 = vrot.lane.b32.xlu0 %v361, 64
      %v665 = vpop.permute.xlu0 %664
      %666 = vrot.lane.b32.xlu0 %v362, 64
      %v667 = vpop.permute.xlu0 %666
      %668 = vrot.lane.b32.xlu0 %v363, 64
      %v669 = vpop.permute.xlu0 %668
      %670 = vrot.lane.b32.xlu0 %v364, 64
      %v671 = vpop.permute.xlu0 %670
      %672 = vrot.lane.b32.xlu0 %v365, 64
      %v673 = vpop.permute.xlu0 %672
      %674 = vrot.lane.b32.xlu0 %v366, 64
      %v675 = vpop.permute.xlu0 %674
      %v684 = vadd.f32 %v605, %v661
      %v685 = vadd.f32 %v610, %v663
      %v686 = vadd.f32 %v615, %v665
      %v687 = vadd.f32 %v620, %v667
      %v688 = vadd.f32 %v625, %v669
      %v689 = vadd.f32 %v630, %v671
      %v690 = vadd.f32 %v635, %v673
      %v691 = vadd.f32 %v640, %v675
      %vm692 = vcmask 556544
      %v693 = vsel %vm692, %v684, -inf
      %v694 = vrot.slane %v693, 4
      %v695 = vmax.f32 %v693, %v694
      %v696 = vrot.slane %v695, 2
      %v697 = vmax.f32 %v695, %v696
      %v698 = vrot.slane %v697, 1
      %v699 = vmax.f32 %v697, %v698
      %v700 = vsel %vm692, %v685, -inf
      %v701 = vrot.slane %v700, 4
      %v702 = vmax.f32 %v700, %v701
      %v703 = vrot.slane %v702, 2
      %v704 = vmax.f32 %v702, %v703
      %v705 = vrot.slane %v704, 1
      %v706 = vmax.f32 %v704, %v705
      %v707 = vsel %vm692, %v686, -inf
      %v708 = vrot.slane %v707, 4
      %v709 = vmax.f32 %v707, %v708
      %v710 = vrot.slane %v709, 2
      %v711 = vmax.f32 %v709, %v710
      %v712 = vrot.slane %v711, 1
      %v713 = vmax.f32 %v711, %v712
      %v714 = vsel %vm692, %v687, -inf
      %v715 = vrot.slane %v714, 4
      %v716 = vmax.f32 %v714, %v715
      %v717 = vrot.slane %v716, 2
      %v718 = vmax.f32 %v716, %v717
      %v719 = vrot.slane %v718, 1
      %v720 = vmax.f32 %v718, %v719
      %v721 = vsel %vm692, %v688, -inf
      %v722 = vrot.slane %v721, 4
      %v723 = vmax.f32 %v721, %v722
      %v724 = vrot.slane %v723, 2
      %v725 = vmax.f32 %v723, %v724
      %v726 = vrot.slane %v725, 1
      %v727 = vmax.f32 %v725, %v726
      %v728 = vsel %vm692, %v689, -inf
      %v729 = vrot.slane %v728, 4
      %v730 = vmax.f32 %v728, %v729
      %v731 = vrot.slane %v730, 2
      %v732 = vmax.f32 %v730, %v731
      %v733 = vrot.slane %v732, 1
      %v734 = vmax.f32 %v732, %v733
      %v735 = vsel %vm692, %v690, -inf
      %v736 = vrot.slane %v735, 4
      %v737 = vmax.f32 %v735, %v736
      %v738 = vrot.slane %v737, 2
      %v739 = vmax.f32 %v737, %v738
      %v740 = vrot.slane %v739, 1
      %v741 = vmax.f32 %v739, %v740
      %v742 = vsel %vm692, %v691, -inf
      %v743 = vrot.slane %v742, 4
      %v744 = vmax.f32 %v742, %v743
      %v745 = vrot.slane %v744, 2
      %v746 = vmax.f32 %v744, %v745
      %v747 = vrot.slane %v746, 1
      %v748 = vmax.f32 %v746, %v747
      %v749 = vsub.f32 %v684, %v699
      %v750 = vsub.f32 %v685, %v706
      %v751 = vsub.f32 %v686, %v713
      %v752 = vsub.f32 %v687, %v720
      %v753 = vsub.f32 %v688, %v727
      %v754 = vsub.f32 %v689, %v734
      %v755 = vsub.f32 %v690, %v741
      %v756 = vsub.f32 %v691, %v748
      %v757 = vmul.f32 %v749, 1.442695
      %v758 = vpow.pop %v757
      %v759 = vmul.f32 %v750, 1.442695
      %v760 = vpow.pop %v759
      %v761 = vmul.f32 %v751, 1.442695
      %v762 = vpow.pop %v761
      %v763 = vmul.f32 %v752, 1.442695
      %v764 = vpow.pop %v763
      %v765 = vmul.f32 %v753, 1.442695
      %v766 = vpow.pop %v765
      %v767 = vmul.f32 %v754, 1.442695
      %v768 = vpow.pop %v767
      %v769 = vmul.f32 %v755, 1.442695
      %v770 = vpow.pop %v769
      %v771 = vmul.f32 %v756, 1.442695
      %v772 = vpow.pop %v771
      %v773 = vsel %vm692, %v758, 0.0
      %v774 = vrot.slane %v773, 4
      %v775 = vadd.f32 %v773, %v774
      %v776 = vrot.slane %v775, 2
      %v777 = vadd.f32 %v775, %v776
      %v778 = vrot.slane %v777, 1
      %v779 = vadd.f32 %v777, %v778
      %v780 = vsel %vm692, %v760, 0.0
      %v781 = vrot.slane %v780, 4
      %v782 = vadd.f32 %v780, %v781
      %v783 = vrot.slane %v782, 2
      %v784 = vadd.f32 %v782, %v783
      %v785 = vrot.slane %v784, 1
      %v786 = vadd.f32 %v784, %v785
      %v787 = vsel %vm692, %v762, 0.0
      %v788 = vrot.slane %v787, 4
      %v789 = vadd.f32 %v787, %v788
      %v790 = vrot.slane %v789, 2
      %v791 = vadd.f32 %v789, %v790
      %v792 = vrot.slane %v791, 1
      %v793 = vadd.f32 %v791, %v792
      %v794 = vsel %vm692, %v764, 0.0
      %v795 = vrot.slane %v794, 4
      %v796 = vadd.f32 %v794, %v795
      %v797 = vrot.slane %v796, 2
      %v798 = vadd.f32 %v796, %v797
      %v799 = vrot.slane %v798, 1
      %v800 = vadd.f32 %v798, %v799
      %v801 = vsel %vm692, %v766, 0.0
      %v802 = vrot.slane %v801, 4
      %v803 = vadd.f32 %v801, %v802
      %v804 = vrot.slane %v803, 2
      %v805 = vadd.f32 %v803, %v804
      %v806 = vrot.slane %v805, 1
      %v807 = vadd.f32 %v805, %v806
      %v808 = vsel %vm692, %v768, 0.0
      %v809 = vrot.slane %v808, 4
      %v810 = vadd.f32 %v808, %v809
      %v811 = vrot.slane %v810, 2
      %v812 = vadd.f32 %v810, %v811
      %v813 = vrot.slane %v812, 1
      %v814 = vadd.f32 %v812, %v813
      %v815 = vsel %vm692, %v770, 0.0
      %v816 = vrot.slane %v815, 4
      %v817 = vadd.f32 %v815, %v816
      %v818 = vrot.slane %v817, 2
      %v819 = vadd.f32 %v817, %v818
      %v820 = vrot.slane %v819, 1
      %v821 = vadd.f32 %v819, %v820
      %v822 = vsel %vm692, %v772, 0.0
      %v823 = vrot.slane %v822, 4
      %v824 = vadd.f32 %v822, %v823
      %v825 = vrot.slane %v824, 2
      %v826 = vadd.f32 %v824, %v825
      %v827 = vrot.slane %v826, 1
      %v828 = vadd.f32 %v826, %v827
      %v829 = vrcp.pop %v779
      %v830 = vrcp.pop %v786
      %v831 = vrcp.pop %v793
      %v832 = vrcp.pop %v800
      %v833 = vrcp.pop %v807
      %v834 = vrcp.pop %v814
      %v835 = vrcp.pop %v821
      %v836 = vrcp.pop %v828
      %v837 = vmul.f32 %v758, %v829
      %v838 = vmul.f32 %v760, %v830
      %v839 = vmul.f32 %v762, %v831
      %v840 = vmul.f32 %v764, %v832
      %v841 = vmul.f32 %v766, %v833
      %v842 = vmul.f32 %v768, %v834
      %v843 = vmul.f32 %v770, %v835
      %v844 = vmul.f32 %v772, %v836
      %845 = vrot.lane.b32.xlu0 %v359, 68
      %v846 = vpop.permute.xlu0 %845
      %847 = vrot.lane.b32.xlu0 %v360, 68
      %v848 = vpop.permute.xlu0 %847
      %849 = vrot.lane.b32.xlu0 %v361, 68
      %v850 = vpop.permute.xlu0 %849
      %851 = vrot.lane.b32.xlu0 %v362, 68
      %v852 = vpop.permute.xlu0 %851
      %853 = vrot.lane.b32.xlu0 %v363, 68
      %v854 = vpop.permute.xlu0 %853
      %855 = vrot.lane.b32.xlu0 %v364, 68
      %v856 = vpop.permute.xlu0 %855
      %857 = vrot.lane.b32.xlu0 %v365, 68
      %v858 = vpop.permute.xlu0 %857
      %859 = vrot.lane.b32.xlu0 %v366, 68
      %v860 = vpop.permute.xlu0 %859
      %v869 = vadd.f32 %v605, %v846
      %v870 = vadd.f32 %v610, %v848
      %v871 = vadd.f32 %v615, %v850
      %v872 = vadd.f32 %v620, %v852
      %v873 = vadd.f32 %v625, %v854
      %v874 = vadd.f32 %v630, %v856
      %v875 = vadd.f32 %v635, %v858
      %v876 = vadd.f32 %v640, %v860
      %vm877 = vcmask 589344
      %v878 = vsel %vm877, %v869, -inf
      %v879 = vsel %vm877, %v870, -inf
      %v880 = vsel %vm877, %v871, -inf
      %v881 = vsel %vm877, %v872, -inf
      %v882 = vsel %vm877, %v873, -inf
      %v883 = vmax.f32 %v878, %v882
      %v884 = vsel %vm877, %v874, -inf
      %v885 = vmax.f32 %v879, %v884
      %v886 = vsel %vm877, %v875, -inf
      %v887 = vmax.f32 %v880, %v886
      %v888 = vsel %vm877, %v876, -inf
      %v889 = vmax.f32 %v881, %v888
      %v890 = vmax.f32 %v883, %v885
      %v891 = vmax.f32 %v887, %v889
      %v892 = vmax.f32 %v890, %v891
      %v893 = vsub.f32 %v869, %v892
      %v894 = vsub.f32 %v870, %v892
      %v895 = vsub.f32 %v871, %v892
      %v896 = vsub.f32 %v872, %v892
      %v897 = vsub.f32 %v873, %v892
      %v898 = vsub.f32 %v874, %v892
      %v899 = vsub.f32 %v875, %v892
      %v900 = vsub.f32 %v876, %v892
      %v901 = vmul.f32 %v893, 1.442695
      %v902 = vpow.pop %v901
      %v903 = vmul.f32 %v894, 1.442695
      %v904 = vpow.pop %v903
      %v905 = vmul.f32 %v895, 1.442695
      %v906 = vpow.pop %v905
      %v907 = vmul.f32 %v896, 1.442695
      %v908 = vpow.pop %v907
      %v909 = vmul.f32 %v897, 1.442695
      %v910 = vpow.pop %v909
      %v911 = vmul.f32 %v898, 1.442695
      %v912 = vpow.pop %v911
      %v913 = vmul.f32 %v899, 1.442695
      %v914 = vpow.pop %v913
      %v915 = vmul.f32 %v900, 1.442695
      %v916 = vpow.pop %v915
      %v917 = vsel %vm877, %v902, 0.0
      %v918 = vsel %vm877, %v904, 0.0
      %v919 = vadd.f32 %v917, %v918
      %v920 = vsel %vm877, %v906, 0.0
      %v921 = vadd.f32 %v919, %v920
      %v922 = vsel %vm877, %v908, 0.0
      %v923 = vadd.f32 %v921, %v922
      %v924 = vsel %vm877, %v910, 0.0
      %v925 = vadd.f32 %v923, %v924
      %v926 = vsel %vm877, %v912, 0.0
      %v927 = vadd.f32 %v925, %v926
      %v928 = vsel %vm877, %v914, 0.0
      %v929 = vadd.f32 %v927, %v928
      %v930 = vsel %vm877, %v916, 0.0
      %v931 = vadd.f32 %v929, %v930
      %v932 = vrcp.pop %v931
      %v933 = vmul.f32 %v902, %v932
      %v934 = vmul.f32 %v904, %v932
      %v935 = vmul.f32 %v906, %v932
      %v936 = vmul.f32 %v908, %v932
      %v937 = vmul.f32 %v910, %v932
      %v938 = vmul.f32 %v912, %v932
      %v939 = vmul.f32 %v914, %v932
      %v940 = vmul.f32 %v916, %v932
      %949 = vrot.lane.b32.xlu0 %v837, 64
      %v950 = vpop.permute.xlu0 %949
      %951 = vrot.lane.b32.xlu0 %v838, 64
      %v952 = vpop.permute.xlu0 %951
      %953 = vrot.lane.b32.xlu0 %v839, 64
      %v954 = vpop.permute.xlu0 %953
      %955 = vrot.lane.b32.xlu0 %v840, 64
      %v956 = vpop.permute.xlu0 %955
      %957 = vrot.lane.b32.xlu0 %v841, 64
      %v958 = vpop.permute.xlu0 %957
      %959 = vrot.lane.b32.xlu0 %v842, 64
      %v960 = vpop.permute.xlu0 %959
      %961 = vrot.lane.b32.xlu0 %v843, 64
      %v962 = vpop.permute.xlu0 %961
      %963 = vrot.lane.b32.xlu0 %v844, 64
      %v964 = vpop.permute.xlu0 %963
      %vm973 = vcmask 31744
      %974 = vst.msk [vmem:[%s345] sm:$0xff] %vm973, %v950
      %975 = vst.msk [vmem:[%s345 + $0x8] sm:$0xff] %vm973, %v952
      %976 = vst.msk [vmem:[%s345 + $0x10] sm:$0xff] %vm973, %v954
      %977 = vst.msk [vmem:[%s345 + $0x18] sm:$0xff] %vm973, %v956
      %978 = vst.msk [vmem:[%s345 + $0x20] sm:$0xff] %vm973, %v958
      %979 = vst.msk [vmem:[%s345 + $0x28] sm:$0xff] %vm973, %v960
      %980 = vst.msk [vmem:[%s345 + $0x30] sm:$0xff] %vm973, %v962
      %981 = vst.msk [vmem:[%s345 + $0x38] sm:$0xff] %vm973, %v964
      %990 = vrot.lane.b32.xlu0 %v933, 60
      %v991 = vpop.permute.xlu0 %990
      %992 = vrot.lane.b32.xlu0 %v934, 60
      %v993 = vpop.permute.xlu0 %992
      %994 = vrot.lane.b32.xlu0 %v935, 60
      %v995 = vpop.permute.xlu0 %994
      %996 = vrot.lane.b32.xlu0 %v936, 60
      %v997 = vpop.permute.xlu0 %996
      %998 = vrot.lane.b32.xlu0 %v937, 60
      %v999 = vpop.permute.xlu0 %998
      %1000 = vrot.lane.b32.xlu0 %v938, 60
      %v1001 = vpop.permute.xlu0 %1000
      %1002 = vrot.lane.b32.xlu0 %v939, 60
      %v1003 = vpop.permute.xlu0 %1002
      %1004 = vrot.lane.b32.xlu0 %v940, 60
      %v1005 = vpop.permute.xlu0 %1004
      %1014 = vst.msk [vmem:[%s350] sm:$0xff] %vm973, %v991
      %1015 = vst.msk [vmem:[%s350 + $0x8] sm:$0xff] %vm973, %v993
      %1016 = vst.msk [vmem:[%s350 + $0x10] sm:$0xff] %vm973, %v995
      %1017 = vst.msk [vmem:[%s350 + $0x18] sm:$0xff] %vm973, %v997
      %1018 = vst.msk [vmem:[%s350 + $0x20] sm:$0xff] %vm973, %v999
      %1019 = vst.msk [vmem:[%s350 + $0x28] sm:$0xff] %vm973, %v1001
      %1020 = vst.msk [vmem:[%s350 + $0x30] sm:$0xff] %vm973, %v1003
      %1021 = vst.msk [vmem:[%s350 + $0x38] sm:$0xff] %vm973, %v1005
      %p1022 = scmp.lt.s32.totalorder %s20, 1
      %s1023 = scalar_select %p1022, %s20, 1
      %s1024 = smul.addr %s1023, 8
      %s1025 = smul.addr %s1024, 8
      %s1026 = scalar_lea.vmem %s6, %s1025
      %p1027 = scmp.lt.s32.totalorder %s20, 1
      %s1028 = scalar_select %p1027, %s20, 1
      %s1029 = smul.addr %s1028, 8
      %s1030 = smul.addr %s1029, 8
      %s1031 = scalar_lea.vmem %s7, %s1030
      %p1032 = scmp.lt.s32.totalorder %s20, 1
      %s1033 = scalar_select %p1032, %s20, 1
      %s1034 = smul.addr %s1033, 8
      %s1035 = smul.addr %s1034, 8
      %s1036 = scalar_lea.vmem %s8, %s1035
      // Predicated region
      $region45: #{triangle_update_ungated.3} parent=43 // pred_check
        %p1037 = pneg %p174
      $region46: #{triangle_update_ungated.3} parent=43 // pred_check_branch
        %1039 = sbr.rel (%p1037) target = $region48
      $region47: #{triangle_update_ungated.3} parent=43 // pred_region
        _
      $region48: #{triangle_update_ungated.3} parent=43 // pred_fallthru
        _
      // Predicated region
      $region49: #{triangle_update_ungated.3} parent=43 // pred_check
        %p1040 = pneg %p200
      $region50: #{triangle_update_ungated.3} parent=43 // pred_check_branch
        %1042 = sbr.rel (%p1040) target = $region52
      $region51: #{triangle_update_ungated.3} parent=43 // pred_region
        _
      $region52: #{triangle_update_ungated.3} parent=43 // pred_fallthru
        _
      // Predicated region
      $region53: #{triangle_update_ungated.3} parent=43 // pred_check
        %p1043 = pneg %p226
      $region54: #{triangle_update_ungated.3} parent=43 // pred_check_branch
        %1045 = sbr.rel (%p1043) target = $region56
      $region55: #{triangle_update_ungated.3} parent=43 // pred_region
        _
      $region56: #{triangle_update_ungated.3} parent=43 // pred_fallthru
        _
    $region44: #{triangle_update_ungated.3} parent=5 // pred_fallthru
      _
    %p1046 = scmp.le.s32.totalorder 2, %s15
    // Predicated region
    $region57: #{triangle_update_ungated.3} parent=5 // pred_check
      %p1047 = pneg %p1046
    $region58: #{triangle_update_ungated.3} parent=5 // pred_check_branch
      %1049 = sbr.rel (%p1047) target = $region60
    $region59: #{triangle_update_ungated.3} parent=5 // pred_region
      %s1050 = ssub.s32 %s15, 2
      // Predicated region
      $region61: #{triangle_update_ungated.3} parent=59 // pred_check
        %p1051 = pneg %p180
      $region62: #{triangle_update_ungated.3} parent=59 // pred_check_branch
        %1053 = sbr.rel (%p1051) target = $region64
      $region63: #{triangle_update_ungated.3} parent=59 // pred_region
        %p1054 = scmp.lt.s32.totalorder %s21, 1
        %s1055 = scalar_select %p1054, %s21, 1
        %s1056 = smul.addr %s1055, 8
        %s1057 = smul.addr %s1056, 8
        %s1058 = scalar_lea.vmem %s6, %s1057
      $region64: #{triangle_update_ungated.3} parent=59 // pred_fallthru
        _
      // Predicated region
      $region65: #{triangle_update_ungated.3} parent=59 // pred_check
        %p1059 = pneg %p206
      $region66: #{triangle_update_ungated.3} parent=59 // pred_check_branch
        %1061 = sbr.rel (%p1059) target = $region68
      $region67: #{triangle_update_ungated.3} parent=59 // pred_region
        %p1062 = scmp.lt.s32.totalorder %s21, 1
        %s1063 = scalar_select %p1062, %s21, 1
        %s1064 = smul.addr %s1063, 8
        %s1065 = smul.addr %s1064, 8
        %s1066 = scalar_lea.vmem %s7, %s1065
      $region68: #{triangle_update_ungated.3} parent=59 // pred_fallthru
        _
      // Predicated region
      $region69: #{triangle_update_ungated.3} parent=59 // pred_check
        %p1067 = pneg %p232
      $region70: #{triangle_update_ungated.3} parent=59 // pred_check_branch
        %1069 = sbr.rel (%p1067) target = $region72
      $region71: #{triangle_update_ungated.3} parent=59 // pred_region
        %p1070 = scmp.lt.s32.totalorder %s21, 1
        %s1071 = scalar_select %p1070, %s21, 1
        %s1072 = smul.addr %s1071, 8
        %s1073 = smul.addr %s1072, 8
        %s1074 = scalar_lea.vmem %s8, %s1073
      $region72: #{triangle_update_ungated.3} parent=59 // pred_fallthru
        _
    $region60: #{triangle_update_ungated.3} parent=5 // pred_fallthru
      _
  $region6: #{triangle_update_ungated.3} parent=0 // loop_footer
    %s19 = sadd.s32 1, %s15
  $region7: #{triangle_update_ungated.3} parent=0 // loop_footer_branch
    %14 = sbr.rel target = $region3
  $region8: #{triangle_update_ungated.3} parent=0 // loop_exit
    _

// kernel: triangle_update_ungated.4
$region0: #{triangle_update_ungated.4}
  #allocation0 [shape = 'u32[]', space=smem, size = 0x4, offset = 0x4, fixed_abs, tag = 'smem constant byte address 0x4 - core index']
  #allocation1 [shape = 'u32[144,128]{1,0:T(1,128)}', space=vmem, size = 0x12000, scoped, tag = 'internal scratch']
  %s0 = inlined_call_operand.vmem [shape: f32[16,8,8], index: 0, kind: input, shape index: {}]
  %s1 = inlined_call_operand.vmem [shape: f32[16,8,64], index: 1, kind: input, shape index: {}]
  %s2 = inlined_call_operand.vmem [shape: f32[16,8,64], index: 2, kind: output, shape index: {}]
  %s3 = sld [smem:[#allocation0]]
  $region41: #{triangle_update_ungated.4} parent=0
    _
  %s5 = ssub.s32 1, %s3
  %s6 = scalar_select 0, %s5, %s3
  loop: start=0, step=1, limit=18
  $region2: #{triangle_update_ungated.4} parent=0 // loop_pre_header
    _
  $region3: #{triangle_update_ungated.4} parent=0 // loop_header
    %s8 = sphi 0, %s12
    %p9 = scmp.ge.s32.totalorder %s8, 18
    %s15 = sphi 0, %s27
    %s16 = sphi 0, %s23
    %s17 = sphi 0, %s15
    %s18 = sphi 0, %s16
    %s19 = sphi 0, %s17
    %s20 = sphi 0, %s18
    %s32 = sphi 0, %s34
    %s35 = sphi 0, %s32
    %s36 = sphi 0, %s35
    %s52 = sphi 0, %s36
    %s58 = sphi 0, %s60
    %s61 = sphi 0, %s58
    %s62 = sphi 0, %s61
    %s78 = sphi 0, %s62
    %s86 = sphi 0, %s88
    %s89 = sphi 0, %s86
    %s90 = sphi 0, %s89
    %s106 = sphi 0, %s90
  $region4: #{triangle_update_ungated.4} parent=0 // loop_header_branch
    %11 = sbr.rel (%p9) target = $region8
  $region5: #{triangle_update_ungated.4} parent=0 // loop_body
    %s13 = ssub.s32 %s8, 1
    %s14 = ssub.s32 %s8, 2
    %s21 = sadd.s32 1, %s16
    %p22 = scmp.ge.s32.totalorder %s21, 1
    %s23 = scalar_select %p22, 0, %s21
    %s24 = sadd.s32 1, %s15
    %s25 = scalar_select %p22, %s24, %s15
    %p26 = scmp.ge.s32.totalorder %s25, 16
    %s27 = scalar_select %p26, 0, %s25
    %s28 = ssub.s32 %s15, %s27
    %s29 = ssub.s32 %s16, %s23
    %s30 = sor.u32 %s28, %s29
    %p31 = scmp.eq.s32.totalorder %s30, 0
    %s33 = sadd.s32 %s32, 1
    %s34 = scalar_select %p31, %s32, %s33
    %p37 = pneg %p31
    %p38 = scmp.eq.s32.totalorder %s8, 15
    %p39 = por %p37, %p38
    %p40 = scmp.ne.s32.totalorder %s32, %s35
    %p41 = scmp.eq.s32.totalorder %s8, 0
    %p42 = por %p40, %p41
    %p43 = scmp.ne.s32.totalorder %s32, %s35
    %p44 = scmp.eq.s32.totalorder %s13, 15
    %p45 = por %p43, %p44
    %p46 = scmp.ne.s32.totalorder %s35, %s36
    %p47 = scmp.eq.s32.totalorder %s13, 0
    %p48 = por %p46, %p47
    %p49 = scmp.ne.s32.totalorder %s35, %s36
    %p50 = scmp.eq.s32.totalorder %s14, 15
    %p51 = por %p49, %p50
    %p53 = scmp.ne.s32.totalorder %s36, %s52
    %p54 = scmp.eq.s32.totalorder %s14, 0
    %p55 = por %p53, %p54
    %s56 = ssub.s32 %s15, %s27
    %p57 = scmp.eq.s32.totalorder %s56, 0
    %s59 = sadd.s32 %s58, 1
    %s60 = scalar_select %p57, %s58, %s59
    %p63 = pneg %p57
    %p64 = scmp.eq.s32.totalorder %s8, 15
    %p65 = por %p63, %p64
    %p66 = scmp.ne.s32.totalorder %s58, %s61
    %p67 = scmp.eq.s32.totalorder %s8, 0
    %p68 = por %p66, %p67
    %p69 = scmp.ne.s32.totalorder %s58, %s61
    %p70 = scmp.eq.s32.totalorder %s13, 15
    %p71 = por %p69, %p70
    %p72 = scmp.ne.s32.totalorder %s61, %s62
    %p73 = scmp.eq.s32.totalorder %s13, 0
    %p74 = por %p72, %p73
    %p75 = scmp.ne.s32.totalorder %s61, %s62
    %p76 = scmp.eq.s32.totalorder %s14, 15
    %p77 = por %p75, %p76
    %p79 = scmp.ne.s32.totalorder %s62, %s78
    %p80 = scmp.eq.s32.totalorder %s14, 0
    %p81 = por %p79, %p80
    %s82 = ssub.s32 %s15, %s27
    %s83 = ssub.s32 %s16, %s23
    %s84 = sor.u32 %s82, %s83
    %p85 = scmp.eq.s32.totalorder %s84, 0
    %s87 = sadd.s32 %s86, 1
    %s88 = scalar_select %p85, %s86, %s87
    %p91 = pneg %p85
    %p92 = scmp.eq.s32.totalorder %s8, 15
    %p93 = por %p91, %p92
    %p94 = scmp.ne.s32.totalorder %s86, %s89
    %p95 = scmp.eq.s32.totalorder %s8, 0
    %p96 = por %p94, %p95
    %p97 = scmp.ne.s32.totalorder %s86, %s89
    %p98 = scmp.eq.s32.totalorder %s13, 15
    %p99 = por %p97, %p98
    %p100 = scmp.ne.s32.totalorder %s89, %s90
    %p101 = scmp.eq.s32.totalorder %s13, 0
    %p102 = por %p100, %p101
    %p103 = scmp.ne.s32.totalorder %s89, %s90
    %p104 = scmp.eq.s32.totalorder %s14, 15
    %p105 = por %p103, %p104
    %p107 = scmp.ne.s32.totalorder %s90, %s106
    %p108 = scmp.eq.s32.totalorder %s14, 0
    %p109 = por %p107, %p108
    %p110 = scmp.le.s32.totalorder 1, %s8
    %p111 = scmp.lt.s32.totalorder %s8, 17
    %p112 = pnand %p110, %p111
    %p113 = pneg %p112
    // Predicated region
    $region9: #{triangle_update_ungated.4} parent=5 // pred_check
      _
    $region10: #{triangle_update_ungated.4} parent=5 // pred_check_branch
      %115 = sbr.rel (%p112) target = $region12
    $region11: #{triangle_update_ungated.4} parent=5 // pred_region
      %s116 = ssub.s32 %s8, 1
    $region12: #{triangle_update_ungated.4} parent=5 // pred_fallthru
      _
    %p117 = scmp.lt.s32.totalorder %s8, 16
    // Predicated region
    $region13: #{triangle_update_ungated.4} parent=5 // pred_check
      %p118 = pneg %p117
    $region14: #{triangle_update_ungated.4} parent=5 // pred_check_branch
      %120 = sbr.rel (%p118) target = $region16
    $region15: #{triangle_update_ungated.4} parent=5 // pred_region
      // Predicated region
      $region17: #{triangle_update_ungated.4} parent=15 // pred_check
        %p121 = pneg %p42
      $region18: #{triangle_update_ungated.4} parent=15 // pred_check_branch
        %123 = sbr.rel (%p121) target = $region20
      $region19: #{triangle_update_ungated.4} parent=15 // pred_region
        %p124 = scmp.lt.s32.totalorder %s15, 15
        %s125 = scalar_select %p124, %s15, 15
        %p126 = scmp.lt.s32.totalorder %s16, 0
        %s127 = scalar_select %p126, %s16, 0
        %s128 = sadd.s32 %s127, %s125
        %s129 = smul.addr %s128, 8
        %s130 = scalar_lea.vmem %s0, %s129
      $region20: #{triangle_update_ungated.4} parent=15 // pred_fallthru
        _
      // Predicated region
      $region21: #{triangle_update_ungated.4} parent=15 // pred_check
        %p131 = pneg %p68
      $region22: #{triangle_update_ungated.4} parent=15 // pred_check_branch
        %133 = sbr.rel (%p131) target = $region24
      $region23: #{triangle_update_ungated.4} parent=15 // pred_region
        %p134 = scmp.lt.s32.totalorder %s15, 15
        %s135 = scalar_select %p134, %s15, 15
        %s136 = smul.addr %s135, 8
        %s137 = scalar_lea.vmem %s1, %s136
      $region24: #{triangle_update_ungated.4} parent=15 // pred_fallthru
        _
    $region16: #{triangle_update_ungated.4} parent=5 // pred_fallthru
      _
    %p138 = scmp.le.s32.totalorder 1, %s8
    %p139 = scmp.lt.s32.totalorder %s8, 17
    %p140 = pnand %p138, %p139
    %p141 = pneg %p140
    // Predicated region
    $region25: #{triangle_update_ungated.4} parent=5 // pred_check
      _
    $region26: #{triangle_update_ungated.4} parent=5 // pred_check_branch
      %143 = sbr.rel (%p140) target = $region28
    $region27: #{triangle_update_ungated.4} parent=5 // pred_region
      %s144 = ssub.s32 %s8, 1
      %p145 = scmp.lt.s32.totalorder %s17, 15
      %s146 = scalar_select %p145, %s17, 15
      %p147 = scmp.lt.s32.totalorder %s18, 0
      %s148 = scalar_select %p147, %s18, 0
      %s149 = sadd.s32 %s148, %s146
      %s150 = smul.addr %s149, 8
      %s151 = scalar_lea.vmem %s0, %s150
      %p152 = pneg %p48
      %p153 = pneg %p45
      %p154 = scmp.lt.s32.totalorder %s17, 15
      %s155 = scalar_select %p154, %s17, 15
      %s156 = smul.addr %s155, 8
      %s157 = scalar_lea.vmem %s1, %s156
      %p158 = pneg %p74
      %p159 = pneg %p71
      %p160 = pneg %p102
      %p161 = pneg %p99
      %p162 = scmp.lt.s32.totalorder %s17, 15
      %s163 = scalar_select %p162, %s17, 15
      %p164 = scmp.lt.s32.totalorder %s18, 0
      %s165 = scalar_select %p164, %s18, 0
      %s166 = sadd.s32 %s165, %s163
      %s167 = smul.addr %s166, 8
      %s168 = scalar_lea.vmem %s2, %s167
      %p169 = scmp.lt.s32.totalorder %s17, 15
      %s170 = scalar_select %p169, %s17, 15
      %p171 = scmp.lt.s32.totalorder %s18, 0
      %s172 = scalar_select %p171, %s18, 0
      %s173 = sadd.s32 %s172, %s170
      %s174 = smul.addr %s173, 8
      %s175 = scalar_lea.vmem %s0, %s174
      %p176 = scmp.lt.s32.totalorder %s17, 15
      %s177 = scalar_select %p176, %s17, 15
      %s178 = smul.addr %s177, 8
      %s179 = scalar_lea.vmem %s1, %s178
      %p180 = scmp.lt.s32.totalorder %s17, 15
      %s181 = scalar_select %p180, %s17, 15
      %p182 = scmp.lt.s32.totalorder %s18, 0
      %s183 = scalar_select %p182, %s18, 0
      %s184 = sadd.s32 %s183, %s181
      %s185 = smul.addr %s184, 8
      %s186 = scalar_lea.vmem %s2, %s185
      %v187 = vld [vmem:[%s175] sm:$0xff]
      %v188 = vld [vmem:[%s179] sm:$0xff]
      %vm189 = vcmask 64512
      %v191 = vsel %vm189, %v187, 0
      %193 = vmatprep.subr.mxu0 0.0
      %194 = vmatpush1.msra.mxu0 %v188
      %195 = vmatprep.subr.mxu0 0.0
      %196 = vmatpush1.msra.mxu0 0.0
      %197 = vmatprep.subr.mxu0 0.0
      %198 = vmatpush1.msra.mxu0 0.0
      %199 = vmatprep.subr.mxu0 0.0
      %200 = vmatpush1.msra.mxu0 0.0
      %201 = vmatprep.subr.mxu0 0.0
      %202 = vmatpush1.msra.mxu0 0.0
      %203 = vmatprep.subr.mxu0 0.0
      %204 = vmatpush1.msra.mxu0 0.0
      %205 = vmatprep.subr.mxu0 0.0
      %206 = vmatpush1.msra.mxu0 0.0
      %207 = vmatprep.subr.mxu0 0.0
      %208 = vmatpush1.msra.mxu0 0.0
      %209 = vmatprep.subr.mxu0 0.0
      %210 = vmatpush1.msra.mxu0 0.0
      %211 = vmatprep.subr.mxu0 0.0
      %212 = vmatpush1.msra.mxu0 0.0
      %213 = vmatprep.subr.mxu0 0.0
      %214 = vmatpush1.msra.mxu0 0.0
      %215 = vmatprep.subr.mxu0 0.0
      %216 = vmatpush1.msra.mxu0 0.0
      %217 = vmatprep.subr.mxu0 0.0
      %218 = vmatpush1.msra.mxu0 0.0
      %219 = vmatprep.subr.mxu0 0.0
      %220 = vmatpush1.msra.mxu0 0.0
      %221 = vmatprep.subr.mxu0 0.0
      %222 = vmatpush1.msra.mxu0 0.0
      %223 = vmatprep.subr.mxu0 0.0
      %224 = vmatpush1.msra.mxu0 0.0
      %225 = vmatprep.subr.mxu0 0.0
      %226 = vmatpush1.msra.mxu0 0.0
      %227 = vmatprep.subr.mxu0 0.0
      %228 = vmatpush1.msra.mxu0 0.0
      %229 = vmatprep.subr.mxu0 0.0
      %230 = vmatpush1.msra.mxu0 0.0
      %231 = vmatprep.subr.mxu0 0.0
      %232 = vmatpush1.msra.mxu0 0.0
      %233 = vmatprep.subr.mxu0 0.0
      %234 = vmatpush1.msra.mxu0 0.0
      %235 = vmatprep.subr.mxu0 0.0
      %236 = vmatpush1.msra.mxu0 0.0
      %237 = vmatprep.subr.mxu0 0.0
      %238 = vmatpush1.msra.mxu0 0.0
      %239 = vmatprep.subr.mxu0 0.0
      %240 = vmatpush1.msra.mxu0 0.0
      %241 = vmatprep.subr.mxu0 0.0
      %242 = vmatpush1.msra.mxu0 0.0
      %243 = vmatprep.subr.mxu0 0.0
      %244 = vmatpush1.msra.mxu0 0.0
      %245 = vmatprep.subr.mxu0 0.0
      %246 = vmatpush1.msra.mxu0 0.0
      %247 = vmatprep.subr.mxu0 0.0
      %248 = vmatpush1.msra.mxu0 0.0
      %249 = vmatprep.subr.mxu0 0.0
      %250 = vmatpush1.msra.mxu0 0.0
      %251 = vmatprep.subr.mxu0 0.0
      %252 = vmatpush1.msra.mxu0 0.0
      %253 = vmatprep.subr.mxu0 0.0
      %254 = vmatpush1.msra.mxu0 0.0
      %255 = vmatprep.subr.mxu0 0.0
      %256 = vmatpush1.msra.mxu0 0.0
      %257 = vmatprep.mubr.f32.mxu0 0.0
      %258 = vmatmul.mubr.f32.gmra.mrb[0].mxu0 %v191
      %v259 = vpop.f32.mrb[0].mxu0
      %v260 = vadd.f32 0.0, %v259
      %v261 = vpop.f32.mrb[0].mxu0
      %262 = vdwg.mxu0
      %vm263 = vcmask 523264
      %264 = vst.msk [vmem:[%s186] sm:$0xff] %vm263, %v260
      %p265 = scmp.lt.s32.totalorder %s17, 15
      %s266 = scalar_select %p265, %s17, 15
      %p267 = scmp.lt.s32.totalorder %s18, 0
      %s268 = scalar_select %p267, %s18, 0
      %s269 = sadd.s32 %s268, %s266
      %s270 = smul.addr %s269, 8
      %s271 = scalar_lea.vmem %s2, %s270
      // Predicated region
      $region29: #{triangle_update_ungated.4} parent=27 // pred_check
        %p272 = pneg %p99
      $region30: #{triangle_update_ungated.4} parent=27 // pred_check_branch
        %274 = sbr.rel (%p272) target = $region32
      $region31: #{triangle_update_ungated.4} parent=27 // pred_region
        _
      $region32: #{triangle_update_ungated.4} parent=27 // pred_fallthru
        _
    $region28: #{triangle_update_ungated.4} parent=5 // pred_fallthru
      _
    %p275 = scmp.le.s32.totalorder 2, %s8
    // Predicated region
    $region33: #{triangle_update_ungated.4} parent=5 // pred_check
      %p276 = pneg %p275
    $region34: #{triangle_update_ungated.4} parent=5 // pred_check_branch
      %278 = sbr.rel (%p276) target = $region36
    $region35: #{triangle_update_ungated.4} parent=5 // pred_region
      %s279 = ssub.s32 %s8, 2
      // Predicated region
      $region37: #{triangle_update_ungated.4} parent=35 // pred_check
        %p280 = pneg %p105
      $region38: #{triangle_update_ungated.4} parent=35 // pred_check_branch
        %282 = sbr.rel (%p280) target = $region40
      $region39: #{triangle_update_ungated.4} parent=35 // pred_region
        %p283 = scmp.lt.s32.totalorder %s19, 15
        %s284 = scalar_select %p283, %s19, 15
        %p285 = scmp.lt.s32.totalorder %s20, 0
        %s286 = scalar_select %p285, %s20, 0
        %s287 = sadd.s32 %s286, %s284
        %s288 = smul.addr %s287, 8
        %s289 = scalar_lea.vmem %s2, %s288
      $region40: #{triangle_update_ungated.4} parent=35 // pred_fallthru
        _
    $region36: #{triangle_update_ungated.4} parent=5 // pred_fallthru
      _
  $region6: #{triangle_update_ungated.4} parent=0 // loop_footer
    %s12 = sadd.s32 1, %s8
  $region7: #{triangle_update_ungated.4} parent=0 // loop_footer_branch
    %7 = sbr.rel target = $region3
  $region8: #{triangle_update_ungated.4} parent=0 // loop_exit
    _

// kernel: triangle_update_ungated.5
$region0: #{triangle_update_ungated.5}
  #allocation0 [shape = 'u32[]', space=smem, size = 0x4, offset = 0x4, fixed_abs, tag = 'smem constant byte address 0x4 - core index']
  #allocation1 [shape = 'u32[144,128]{1,0:T(1,128)}', space=vmem, size = 0x12000, scoped, tag = 'internal scratch']
  %s0 = inlined_call_operand.vmem [shape: f32[128,64], index: 0, kind: input, shape index: {}]
  %s1 = inlined_call_operand.vmem [shape: f32[64,32], index: 1, kind: input, shape index: {}]
  %s2 = inlined_call_operand.vmem [shape: f32[1,32], index: 2, kind: input, shape index: {}]
  %s3 = inlined_call_operand.hbm [shape: f32[128,32], index: 3, kind: output, shape index: {}]
  %s4 = sld [smem:[#allocation0]]
  $region22: #{triangle_update_ungated.5} parent=0
    _
  %s6 = ssub.s32 1, %s4
  %s7 = scalar_select 0, %s6, %s4
  $region1: #{triangle_update_ungated.5} parent=0
    #allocation2 [shape = 'u8[65536]{0}', space=vmem, size = 0x10000, scoped, tag = 'output window, operand 0, single buffered']
    #allocation3 [shape = 's32[1]{0}', space=sflag, size = 0x4, scoped, tag = 'scoped memory for triangle_update_ungated.5']
    %8 = vsyncpa [#allocation3], 0
    // Predicated region
    $region2: #{triangle_update_ungated.5} parent=1 // pred_check
      _
    $region3: #{triangle_update_ungated.5} parent=1 // pred_check_branch
      %10 = sbr.rel (0) target = $region5
    $region4: #{triangle_update_ungated.5} parent=1 // pred_region
      _
    $region5: #{triangle_update_ungated.5} parent=1 // pred_fallthru
      _
    // Predicated region
    $region6: #{triangle_update_ungated.5} parent=1 // pred_check
      _
    $region7: #{triangle_update_ungated.5} parent=1 // pred_check_branch
      %12 = sbr.rel (0) target = $region9
    $region8: #{triangle_update_ungated.5} parent=1 // pred_region
      _
    $region9: #{triangle_update_ungated.5} parent=1 // pred_fallthru
      _
    // Predicated region
    $region10: #{triangle_update_ungated.5} parent=1 // pred_check
      _
    $region11: #{triangle_update_ungated.5} parent=1 // pred_check_branch
      %14 = sbr.rel (0) target = $region13
    $region12: #{triangle_update_ungated.5} parent=1 // pred_region
      _
    $region13: #{triangle_update_ungated.5} parent=1 // pred_fallthru
      _
    %v15 = vld [vmem:[%s0] sm:$0xff]
    %v16 = vld [vmem:[%s0 + $0x8] sm:$0xff]
    %v17 = vld [vmem:[%s0 + $0x10] sm:$0xff]
    %v18 = vld [vmem:[%s0 + $0x18] sm:$0xff]
    %v19 = vld [vmem:[%s0 + $0x20] sm:$0xff]
    %v20 = vld [vmem:[%s0 + $0x28] sm:$0xff]
    %v21 = vld [vmem:[%s0 + $0x30] sm:$0xff]
    %v22 = vld [vmem:[%s0 + $0x38] sm:$0xff]
    %v23 = vld [vmem:[%s0 + $0x40] sm:$0xff]
    %v24 = vld [vmem:[%s0 + $0x48] sm:$0xff]
    %v25 = vld [vmem:[%s0 + $0x50] sm:$0xff]
    %v26 = vld [vmem:[%s0 + $0x58] sm:$0xff]
    %v27 = vld [vmem:[%s0 + $0x60] sm:$0xff]
    %v28 = vld [vmem:[%s0 + $0x68] sm:$0xff]
    %v29 = vld [vmem:[%s0 + $0x70] sm:$0xff]
    %v30 = vld [vmem:[%s0 + $0x78] sm:$0xff]
    %v31 = vld [vmem:[%s1] sm:$0xff]
    %v32 = vld [vmem:[%s1 + $0x8] sm:$0xff]
    %v33 = vld [vmem:[%s1 + $0x10] sm:$0xff]
    %v34 = vld [vmem:[%s1 + $0x18] sm:$0xff]
    %v35 = vld [vmem:[%s1 + $0x20] sm:$0xff]
    %v36 = vld [vmem:[%s1 + $0x28] sm:$0xff]
    %v37 = vld [vmem:[%s1 + $0x30] sm:$0xff]
    %v38 = vld [vmem:[%s1 + $0x38] sm:$0xff]
    %v39 = vld [vmem:[%s2] sm:$0x1]
    %v41 = vlaneseq
    %v42 = vshrl.u32 %v41, 7
    %v43 = vsub.s32 0, %v42
    %v44 = vrot.slane %v39, %v43
    %vm46 = vcmask 523264
    %v48 = vsel %vm46, %v15, 0
    %v51 = vsel %vm46, %v16, 0
    %v54 = vsel %vm46, %v17, 0
    %v57 = vsel %vm46, %v18, 0
    %v60 = vsel %vm46, %v19, 0
    %v63 = vsel %vm46, %v20, 0
    %v66 = vsel %vm46, %v21, 0
    %v69 = vsel %vm46, %v22, 0
    %v72 = vsel %vm46, %v23, 0
    %v75 = vsel %vm46, %v24, 0
    %v78 = vsel %vm46, %v25, 0
    %v81 = vsel %vm46, %v26, 0
    %v84 = vsel %vm46, %v27, 0
    %v87 = vsel %vm46, %v28, 0
    %v90 = vsel %vm46, %v29, 0
    %v93 = vsel %vm46, %v30, 0
    %95 = vmatprep.subr.mxu0 0.0
    %96 = vmatpush1.msra.mxu0 %v31
    %97 = vmatprep.subr.mxu0 0.0
    %98 = vmatpush1.msra.mxu0 %v32
    %99 = vmatprep.subr.mxu0 0.0
    %100 = vmatpush1.msra.mxu0 %v33
    %101 = vmatprep.subr.mxu0 0.0
    %102 = vmatpush1.msra.mxu0 %v34
    %103 = vmatprep.subr.mxu0 0.0
    %104 = vmatpush1.msra.mxu0 %v35
    %105 = vmatprep.subr.mxu0 0.0
    %106 = vmatpush1.msra.mxu0 %v36
    %107 = vmatprep.subr.mxu0 0.0
    %108 = vmatpush1.msra.mxu0 %v37
    %109 = vmatprep.subr.mxu0 0.0
    %110 = vmatpush1.msra.mxu0 %v38
    %111 = vmatprep.subr.mxu0 0.0
    %112 = vmatpush1.msra.mxu0 0.0
    %113 = vmatprep.subr.mxu0 0.0
    %114 = vmatpush1.msra.mxu0 0.0
    %115 = vmatprep.subr.mxu0 0.0
    %116 = vmatpush1.msra.mxu0 0.0
    %117 = vmatprep.subr.mxu0 0.0
    %118 = vmatpush1.msra.mxu0 0.0
    %119 = vmatprep.subr.mxu0 0.0
    %120 = vmatpush1.msra.mxu0 0.0
    %121 = vmatprep.subr.mxu0 0.0
    %122 = vmatpush1.msra.mxu0 0.0
    %123 = vmatprep.subr.mxu0 0.0
    %124 = vmatpush1.msra.mxu0 0.0
    %125 = vmatprep.subr.mxu0 0.0
    %126 = vmatpush1.msra.mxu0 0.0
    %127 = vmatprep.subr.mxu0 0.0
    %128 = vmatpush1.msra.mxu0 0.0
    %129 = vmatprep.subr.mxu0 0.0
    %130 = vmatpush1.msra.mxu0 0.0
    %131 = vmatprep.subr.mxu0 0.0
    %132 = vmatpush1.msra.mxu0 0.0
    %133 = vmatprep.subr.mxu0 0.0
    %134 = vmatpush1.msra.mxu0 0.0
    %135 = vmatprep.subr.mxu0 0.0
    %136 = vmatpush1.msra.mxu0 0.0
    %137 = vmatprep.subr.mxu0 0.0
    %138 = vmatpush1.msra.mxu0 0.0
    %139 = vmatprep.subr.mxu0 0.0
    %140 = vmatpush1.msra.mxu0 0.0
    %141 = vmatprep.subr.mxu0 0.0
    %142 = vmatpush1.msra.mxu0 0.0
    %143 = vmatprep.subr.mxu0 0.0
    %144 = vmatpush1.msra.mxu0 0.0
    %145 = vmatprep.subr.mxu0 0.0
    %146 = vmatpush1.msra.mxu0 0.0
    %147 = vmatprep.subr.mxu0 0.0
    %148 = vmatpush1.msra.mxu0 0.0
    %149 = vmatprep.subr.mxu0 0.0
    %150 = vmatpush1.msra.mxu0 0.0
    %151 = vmatprep.subr.mxu0 0.0
    %152 = vmatpush1.msra.mxu0 0.0
    %153 = vmatprep.subr.mxu0 0.0
    %154 = vmatpush1.msra.mxu0 0.0
    %155 = vmatprep.subr.mxu0 0.0
    %156 = vmatpush1.msra.mxu0 0.0
    %157 = vmatprep.subr.mxu0 0.0
    %158 = vmatpush1.msra.mxu0 0.0
    %159 = vmatprep.mubr.f32.mxu0 0.0
    %160 = vmatmul.mubr.f32.gmra.mrb[0].mxu0 %v48
    %v161 = vpop.f32.mrb[0].mxu0
    %v162 = vadd.f32 %v44, %v161
    %v163 = vpop.f32.mrb[0].mxu0
    %164 = vmatprep.mubr.f32.mxu0 0.0
    %165 = vmatmul.mubr.f32.gmra.mrb[0].mxu0 %v51
    %v166 = vpop.f32.mrb[0].mxu0
    %v167 = vadd.f32 %v44, %v166
    %v168 = vpop.f32.mrb[0].mxu0
    %169 = vmatprep.mubr.f32.mxu0 0.0
    %170 = vmatmul.mubr.f32.gmra.mrb[0].mxu0 %v54
    %v171 = vpop.f32.mrb[0].mxu0
    %v172 = vadd.f32 %v44, %v171
    %v173 = vpop.f32.mrb[0].mxu0
    %174 = vmatprep.mubr.f32.mxu0 0.0
    %175 = vmatmul.mubr.f32.gmra.mrb[0].mxu0 %v57
    %v176 = vpop.f32.mrb[0].mxu0
    %v177 = vadd.f32 %v44, %v176
    %v178 = vpop.f32.mrb[0].mxu0
    %179 = vmatprep.mubr.f32.mxu0 0.0
    %180 = vmatmul.mubr.f32.gmra.mrb[0].mxu0 %v60
    %v181 = vpop.f32.mrb[0].mxu0
    %v182 = vadd.f32 %v44, %v181
    %v183 = vpop.f32.mrb[0].mxu0
    %184 = vmatprep.mubr.f32.mxu0 0.0
    %185 = vmatmul.mubr.f32.gmra.mrb[0].mxu0 %v63
    %v186 = vpop.f32.mrb[0].mxu0
    %v187 = vadd.f32 %v44, %v186
    %v188 = vpop.f32.mrb[0].mxu0
    %189 = vmatprep.mubr.f32.mxu0 0.0
    %190 = vmatmul.mubr.f32.gmra.mrb[0].mxu0 %v66
    %v191 = vpop.f32.mrb[0].mxu0
    %v192 = vadd.f32 %v44, %v191
    %v193 = vpop.f32.mrb[0].mxu0
    %194 = vmatprep.mubr.f32.mxu0 0.0
    %195 = vmatmul.mubr.f32.gmra.mrb[0].mxu0 %v69
    %v196 = vpop.f32.mrb[0].mxu0
    %v197 = vadd.f32 %v44, %v196
    %v198 = vpop.f32.mrb[0].mxu0
    %199 = vmatprep.mubr.f32.mxu0 0.0
    %200 = vmatmul.mubr.f32.gmra.mrb[0].mxu0 %v72
    %v201 = vpop.f32.mrb[0].mxu0
    %v202 = vadd.f32 %v44, %v201
    %v203 = vpop.f32.mrb[0].mxu0
    %204 = vmatprep.mubr.f32.mxu0 0.0
    %205 = vmatmul.mubr.f32.gmra.mrb[0].mxu0 %v75
    %v206 = vpop.f32.mrb[0].mxu0
    %v207 = vadd.f32 %v44, %v206
    %v208 = vpop.f32.mrb[0].mxu0
    %209 = vmatprep.mubr.f32.mxu0 0.0
    %210 = vmatmul.mubr.f32.gmra.mrb[0].mxu0 %v78
    %v211 = vpop.f32.mrb[0].mxu0
    %v212 = vadd.f32 %v44, %v211
    %v213 = vpop.f32.mrb[0].mxu0
    %214 = vmatprep.mubr.f32.mxu0 0.0
    %215 = vmatmul.mubr.f32.gmra.mrb[0].mxu0 %v81
    %v216 = vpop.f32.mrb[0].mxu0
    %v217 = vadd.f32 %v44, %v216
    %v218 = vpop.f32.mrb[0].mxu0
    %219 = vmatprep.mubr.f32.mxu0 0.0
    %220 = vmatmul.mubr.f32.gmra.mrb[0].mxu0 %v84
    %v221 = vpop.f32.mrb[0].mxu0
    %v222 = vadd.f32 %v44, %v221
    %v223 = vpop.f32.mrb[0].mxu0
    %224 = vmatprep.mubr.f32.mxu0 0.0
    %225 = vmatmul.mubr.f32.gmra.mrb[0].mxu0 %v87
    %v226 = vpop.f32.mrb[0].mxu0
    %v227 = vadd.f32 %v44, %v226
    %v228 = vpop.f32.mrb[0].mxu0
    %229 = vmatprep.mubr.f32.mxu0 0.0
    %230 = vmatmul.mubr.f32.gmra.mrb[0].mxu0 %v90
    %v231 = vpop.f32.mrb[0].mxu0
    %v232 = vadd.f32 %v44, %v231
    %v233 = vpop.f32.mrb[0].mxu0
    %234 = vmatprep.mubr.f32.mxu0 0.0
    %235 = vmatmul.mubr.f32.gmra.mrb[0].mxu0 %v93
    %v236 = vpop.f32.mrb[0].mxu0
    %v237 = vadd.f32 %v44, %v236
    %v238 = vpop.f32.mrb[0].mxu0
    %239 = vdwg.mxu0
    %vm240 = vcmask 261120
    %241 = vst.msk [vmem:[#allocation2] sm:$0xff] %vm240, %v162
    %242 = vst.msk [vmem:[#allocation2 + $0x8] sm:$0xff] %vm240, %v167
    %243 = vst.msk [vmem:[#allocation2 + $0x10] sm:$0xff] %vm240, %v172
    %244 = vst.msk [vmem:[#allocation2 + $0x18] sm:$0xff] %vm240, %v177
    %245 = vst.msk [vmem:[#allocation2 + $0x20] sm:$0xff] %vm240, %v182
    %246 = vst.msk [vmem:[#allocation2 + $0x28] sm:$0xff] %vm240, %v187
    %247 = vst.msk [vmem:[#allocation2 + $0x30] sm:$0xff] %vm240, %v192
    %248 = vst.msk [vmem:[#allocation2 + $0x38] sm:$0xff] %vm240, %v197
    %249 = vst.msk [vmem:[#allocation2 + $0x40] sm:$0xff] %vm240, %v202
    %250 = vst.msk [vmem:[#allocation2 + $0x48] sm:$0xff] %vm240, %v207
    %251 = vst.msk [vmem:[#allocation2 + $0x50] sm:$0xff] %vm240, %v212
    %252 = vst.msk [vmem:[#allocation2 + $0x58] sm:$0xff] %vm240, %v217
    %253 = vst.msk [vmem:[#allocation2 + $0x60] sm:$0xff] %vm240, %v222
    %254 = vst.msk [vmem:[#allocation2 + $0x68] sm:$0xff] %vm240, %v227
    %255 = vst.msk [vmem:[#allocation2 + $0x70] sm:$0xff] %vm240, %v232
    %256 = vst.msk [vmem:[#allocation2 + $0x78] sm:$0xff] %vm240, %v237
    // Predicated region
    $region14: #{triangle_update_ungated.5} parent=1 // pred_check
      _
    $region15: #{triangle_update_ungated.5} parent=1 // pred_check_branch
      %258 = sbr.rel (0) target = $region17
    $region16: #{triangle_update_ungated.5} parent=1 // pred_region
      %s260 = ssub.s32 2048, 2048
      %261 = vsyncadd [#allocation3], %s260
      %s262 = sshll.u32 [#allocation2], 4
      %s263 = int_to_ptr.vmem [resolvable:$true] %s262
      %268 = dma.vmem_to_hbm [thread:$0]  %s263, 2048, %s3, [#allocation3], 128, 128, 8
    $region17: #{triangle_update_ungated.5} parent=1 // pred_fallthru
      _
    // Predicated region
    $region18: #{triangle_update_ungated.5} parent=1 // pred_check
      _
    $region19: #{triangle_update_ungated.5} parent=1 // pred_check_branch
      %270 = sbr.rel (0) target = $region21
    $region20: #{triangle_update_ungated.5} parent=1 // pred_region
      %271 = dma.done [#allocation3], 2048
    $region21: #{triangle_update_ungated.5} parent=1 // pred_fallthru
      _
    %272 = vsyncpa [#allocation3], 1

</llo_original>
